<compile_context>
chip_gen: v5e
topology: v5e:2x2
jax: 0.10.0
libtpu: 0.0.40
codegen_flags: <defaults>
</compile_context>

<pallas_src>
import jax
import jax.numpy as jnp
from jax.experimental import pallas as pl
from jax.experimental.pallas import tpu as pltpu

# ---- LM_LSTM config (emb_size == hidden_size, weight_tying=False, n_layers=3) ----
VOCAB = 32        # output_size
EMB = 32          # emb_size
HID = 32          # hidden_size
N_LAYERS = 3
PAD_IDX = 0


def make_lm_lstm_kernel(T, B):
    """Single-invocation kernel: full 3-layer LSTM over the sequence + projection."""

    def kernel(emb_ref, wih_ref, whh_ref, bias_ref, wout_ref, bout_ref, out_ref):
        # emb_ref : (T*B, EMB) f32 embedded tokens (row t*B + b)
        # wih_ref : (L, EMB, 4H) transposed weight_ih per layer
        # whh_ref : (L, HID, 4H) transposed weight_hh per layer
        # bias_ref: (L, 1, 4H)   fused bias_ih + bias_hh per layer
        # wout_ref: (HID, VOCAB) transposed Linear weight
        # bout_ref: (1, VOCAB)   Linear bias
        # out_ref : (T*B, VOCAB) logits slab
        x_seq = emb_ref[...]                                   # (T*B, EMB)

        for l in range(N_LAYERS):                              # static unroll over layers
            wih = wih_ref[l]                                   # (EMB, 4H)
            whh = whh_ref[l]                                   # (HID, 4H)
            bias = bias_ref[l]                                 # (1, 4H)

            # Non-recurrent part for the whole sequence: one batched matmul (M = T*B).
            gates_pre = jnp.dot(x_seq, wih,
                                preferred_element_type=jnp.float32) + bias  # (T*B, 4H)

            h = jnp.zeros((B, HID), jnp.float32)               # state lives in vregs
            c = jnp.zeros((B, HID), jnp.float32)
            hs = []
            for t in range(T):                                 # static unroll over time
                g_t = gates_pre[t * B:(t + 1) * B, :] + jnp.dot(
                    h, whh, preferred_element_type=jnp.float32)       # (B, 4H)
                # Full-width transcendentals (EUP), then cheap lane selections.
                sig = jax.nn.sigmoid(g_t)
                th = jnp.tanh(g_t)
                i_g = sig[:, 0 * HID:1 * HID]
                f_g = sig[:, 1 * HID:2 * HID]
                g_g = th[:, 2 * HID:3 * HID]
                o_g = sig[:, 3 * HID:4 * HID]
                c = f_g * c + i_g * g_g
                h = o_g * jnp.tanh(c)
                hs.append(h)                                   # inter-layer dropout: identity (eval)

            x_seq = jnp.concatenate(hs, axis=0)                # (T*B, HID)

        # self.output(tmp_output): one (T*B, HID) x (HID, VOCAB) matmul.
        logits = jnp.dot(x_seq, wout_ref[...],
                         preferred_element_type=jnp.float32) + bout_ref[...]
        out_ref[...] = logits.astype(out_ref.dtype)

    return kernel


def lm_lstm_forward(token_ids, params):
    """token_ids: (T, B) int32  ->  (T, VOCAB, B) float32 logits (after permute(0,2,1))."""
    T, B = token_ids.shape
    # Embedding lookup (glue, plain JAX gather). padding_idx row is zeroed at init.
    emb = jnp.take(params["emb_weight"], token_ids, axis=0)        # (T, B, EMB)
    emb_flat = emb.reshape(T * B, EMB)

    out = pl.pallas_call(
        make_lm_lstm_kernel(T, B),
        out_shape=jax.ShapeDtypeStruct((T * B, VOCAB), jnp.float32),
        grid_spec=pl.GridSpec(
            grid=(1,),
            in_specs=[
                pl.BlockSpec((T * B, EMB), lambda i: (0, 0)),
                pl.BlockSpec((N_LAYERS, EMB, 4 * HID), lambda i: (0, 0, 0)),
                pl.BlockSpec((N_LAYERS, HID, 4 * HID), lambda i: (0, 0, 0)),
                pl.BlockSpec((N_LAYERS, 1, 4 * HID), lambda i: (0, 0, 0)),
                pl.BlockSpec((HID, VOCAB), lambda i: (0, 0)),
                pl.BlockSpec((1, VOCAB), lambda i: (0, 0)),
            ],
            out_specs=pl.BlockSpec((T * B, VOCAB), lambda i: (0, 0)),
        ),
        compiler_params=pltpu.CompilerParams(
            dimension_semantics=("arbitrary",)),
    )(emb_flat, params["w_ih"], params["w_hh"], params["bias"],
      params["w_out_T"], params["b_out"])

    # PyTorch: self.output(tmp_output).permute(0, 2, 1)  ->  (T, VOCAB, B)
    return jnp.transpose(out.reshape(T, B, VOCAB), (0, 2, 1))


def init_params(key):
    """Deterministic synthetic parameters matching the nn.Module shapes."""
    ks = jax.random.split(key, 7)
    bound = 1.0 / jnp.sqrt(jnp.float32(HID))

    def u(k, shape):
        return jax.random.uniform(k, shape, jnp.float32, -bound, bound)

    emb_w = jax.random.normal(ks[0], (VOCAB, EMB), jnp.float32)
    emb_w = emb_w.at[PAD_IDX].set(0.0)          # nn.Embedding(padding_idx) zeroes that row

    # PyTorch nn.LSTM shapes: weight_ih_l{k}: (4H, in), weight_hh_l{k}: (4H, H)
    # EMB == HID so all layers stack; transpose once for lane-friendly matmuls in-kernel.
    w_ih = u(ks[1], (N_LAYERS, 4 * HID, EMB))
    w_hh = u(ks[2], (N_LAYERS, 4 * HID, HID))
    b_ih = u(ks[3], (N_LAYERS, 4 * HID))
    b_hh = u(ks[4], (N_LAYERS, 4 * HID))
    w_out = u(ks[5], (VOCAB, HID))              # nn.Linear(hidden_size, output_size)
    b_out = u(ks[6], (VOCAB,))

    return dict(
        emb_weight=emb_w,
        w_ih=jnp.transpose(w_ih, (0, 2, 1)),                  # (L, EMB, 4H)
        w_hh=jnp.transpose(w_hh, (0, 2, 1)),                  # (L, HID, 4H)
        bias=(b_ih + b_hh).reshape(N_LAYERS, 1, 4 * HID),     # fused b_ih + b_hh
        w_out_T=w_out.T,                                      # (HID, VOCAB)
        b_out=b_out.reshape(1, VOCAB),
    )


def reference_forward(token_ids, params):
    """Pure-JAX reference (lax.scan LSTM) for correctness check."""
    emb = jnp.take(params["emb_weight"], token_ids, axis=0)
    _, B, _ = emb.shape
    x = emb
    for l in range(N_LAYERS):
        wih, whh = params["w_ih"][l], params["w_hh"][l]
        bias = params["bias"][l]

        def step(carry, xt, wih=wih, whh=whh, bias=bias):
            h, c = carry
            gates = xt @ wih + h @ whh + bias
            i = jax.nn.sigmoid(gates[:, :HID])
            f = jax.nn.sigmoid(gates[:, HID:2 * HID])
            g = jnp.tanh(gates[:, 2 * HID:3 * HID])
            o = jax.nn.sigmoid(gates[:, 3 * HID:])
            c = f * c + i * g
            h = o * jnp.tanh(c)
            return (h, c), h

        init = (jnp.zeros((B, HID), jnp.float32), jnp.zeros((B, HID), jnp.float32))
        _, x = jax.lax.scan(step, init, x)
    logits = x @ params["w_out_T"] + params["b_out"]
    return jnp.transpose(logits, (0, 2, 1))


if __name__ == "__main__":
    key = jax.random.PRNGKey(0)
    pkey, tkey = jax.random.split(key)
    params = init_params(pkey)

    T, B = 8, 2
    token_ids = jax.random.randint(tkey, (T, B), 0, VOCAB, dtype=jnp.int32)

    out = lm_lstm_forward(token_ids, params)
    out = jax.block_until_ready(out)

    assert out.shape == (T, VOCAB, B), out.shape
    ref = jax.block_until_ready(reference_forward(token_ids, params))
    assert jnp.all(jnp.isfinite(out))
    assert jnp.allclose(out, ref, atol=1e-3, rtol=1e-3), float(jnp.max(jnp.abs(out - ref)))

    print("KERNEL_OK")
</pallas_src>

<mosaic_0001>
module attributes {stable_mosaic.version = 11 : i64} {
  func.func @kernel(%arg0: i32, %arg1: memref<16x32xf32, #tpu.memory_space<vmem>>, %arg2: memref<3x32x128xf32, #tpu.memory_space<vmem>>, %arg3: memref<3x32x128xf32, #tpu.memory_space<vmem>>, %arg4: memref<3x1x128xf32, #tpu.memory_space<vmem>>, %arg5: memref<32x32xf32, #tpu.memory_space<vmem>>, %arg6: memref<1x32xf32, #tpu.memory_space<vmem>>, %arg7: memref<16x32xf32, #tpu.memory_space<vmem>>) attributes {dimension_semantics = [#tpu.dimension_semantics<arbitrary>], iteration_bounds = array<i64: 1>, scalar_prefetch = 0 : i64, scratch_operands = 0 : i64, tpu.core_type = #tpu.core_type<tc>, window_params = [{pipeline_mode = #tpu.pipeline_mode<synchronous>, transform_indices = @transform_0, window_bounds = array<i64: 16, 32>}, {pipeline_mode = #tpu.pipeline_mode<synchronous>, transform_indices = @transform_1, window_bounds = array<i64: 3, 32, 128>}, {pipeline_mode = #tpu.pipeline_mode<synchronous>, transform_indices = @transform_2, window_bounds = array<i64: 3, 32, 128>}, {pipeline_mode = #tpu.pipeline_mode<synchronous>, transform_indices = @transform_3, window_bounds = array<i64: 3, 1, 128>}, {pipeline_mode = #tpu.pipeline_mode<synchronous>, transform_indices = @transform_4, window_bounds = array<i64: 32, 32>}, {pipeline_mode = #tpu.pipeline_mode<synchronous>, transform_indices = @transform_5, window_bounds = array<i64: 1, 32>}, {pipeline_mode = #tpu.pipeline_mode<synchronous>, transform_indices = @transform_6, window_bounds = array<i64: 16, 32>}]} {
    %c0 = arith.constant 0 : index
    %c0_0 = arith.constant 0 : index
    %0 = vector.load %arg1[%c0, %c0_0] : memref<16x32xf32, #tpu.memory_space<vmem>>, vector<16x32xf32>
    %c0_1 = arith.constant 0 : index
    %c0_2 = arith.constant 0 : index
    %c0_3 = arith.constant 0 : index
    %1 = vector.load %arg2[%c0_1, %c0_2, %c0_3] : memref<3x32x128xf32, #tpu.memory_space<vmem>>, vector<1x32x128xf32>
    %2 = vector.shape_cast %1 : vector<1x32x128xf32> to vector<32x128xf32>
    %c0_4 = arith.constant 0 : index
    %c0_5 = arith.constant 0 : index
    %c0_6 = arith.constant 0 : index
    %3 = vector.load %arg3[%c0_4, %c0_5, %c0_6] : memref<3x32x128xf32, #tpu.memory_space<vmem>>, vector<1x32x128xf32>
    %4 = vector.shape_cast %3 : vector<1x32x128xf32> to vector<32x128xf32>
    %c0_7 = arith.constant 0 : index
    %c0_8 = arith.constant 0 : index
    %c0_9 = arith.constant 0 : index
    %5 = vector.load %arg4[%c0_7, %c0_8, %c0_9] : memref<3x1x128xf32, #tpu.memory_space<vmem>>, vector<1x1x128xf32>
    %6 = vector.shape_cast %5 : vector<1x1x128xf32> to vector<1x128xf32>
    %cst = arith.constant dense<0.000000e+00> : vector<16x128xf32>
    %7 = tpu.matmul %0, %2, %cst {dimension_numbers = #tpu.dot_dimension_numbers<[1], [0], [0], [1], [0, 0, 1, 1], [], []>} : vector<16x32xf32>, vector<32x128xf32>, vector<16x128xf32> -> vector<16x128xf32>
    %8 = vector.broadcast %6 : vector<1x128xf32> to vector<16x128xf32>
    %9 = arith.addf %7, %8 : vector<16x128xf32>
    %cst_10 = arith.constant 0.000000e+00 : f32
    %10 = vector.broadcast %cst_10 : f32 to vector<2x32xf32>
    %cst_11 = arith.constant 0.000000e+00 : f32
    %11 = vector.broadcast %cst_11 : f32 to vector<2x32xf32>
    %12 = vector.extract_strided_slice %9 {offsets = [0, 0], sizes = [2, 128], strides = [1, 1]} : vector<16x128xf32> to vector<2x128xf32>
    %cst_12 = arith.constant dense<0.000000e+00> : vector<2x128xf32>
    %13 = tpu.matmul %10, %4, %cst_12 {dimension_numbers = #tpu.dot_dimension_numbers<[1], [0], [0], [1], [0, 0, 1, 1], [], []>} : vector<2x32xf32>, vector<32x128xf32>, vector<2x128xf32> -> vector<2x128xf32>
    %14 = arith.addf %12, %13 : vector<2x128xf32>
    %15 = arith.negf %14 : vector<2x128xf32>
    %16 = math.exp %15 : vector<2x128xf32>
    %cst_13 = arith.constant 1.000000e+00 : f32
    %17 = vector.broadcast %cst_13 : f32 to vector<2x128xf32>
    %18 = arith.addf %17, %16 : vector<2x128xf32>
    %19 = arith.divf %17, %18 : vector<2x128xf32>
    %20 = math.tanh %14 : vector<2x128xf32>
    %21 = vector.extract_strided_slice %19 {offsets = [0, 0], sizes = [2, 32], strides = [1, 1]} : vector<2x128xf32> to vector<2x32xf32>
    %22 = vector.extract_strided_slice %19 {offsets = [0, 32], sizes = [2, 32], strides = [1, 1]} : vector<2x128xf32> to vector<2x32xf32>
    %23 = vector.extract_strided_slice %20 {offsets = [0, 64], sizes = [2, 32], strides = [1, 1]} : vector<2x128xf32> to vector<2x32xf32>
    %24 = vector.extract_strided_slice %19 {offsets = [0, 96], sizes = [2, 32], strides = [1, 1]} : vector<2x128xf32> to vector<2x32xf32>
    %25 = arith.mulf %22, %11 : vector<2x32xf32>
    %26 = arith.mulf %21, %23 : vector<2x32xf32>
    %27 = arith.addf %25, %26 : vector<2x32xf32>
    %28 = math.tanh %27 : vector<2x32xf32>
    %29 = arith.mulf %24, %28 : vector<2x32xf32>
    %30 = vector.extract_strided_slice %9 {offsets = [2, 0], sizes = [2, 128], strides = [1, 1]} : vector<16x128xf32> to vector<2x128xf32>
    %cst_14 = arith.constant dense<0.000000e+00> : vector<2x128xf32>
    %31 = tpu.matmul %29, %4, %cst_14 {dimension_numbers = #tpu.dot_dimension_numbers<[1], [0], [0], [1], [0, 0, 1, 1], [], []>} : vector<2x32xf32>, vector<32x128xf32>, vector<2x128xf32> -> vector<2x128xf32>
    %32 = arith.addf %30, %31 : vector<2x128xf32>
    %33 = arith.negf %32 : vector<2x128xf32>
    %34 = math.exp %33 : vector<2x128xf32>
    %cst_15 = arith.constant 1.000000e+00 : f32
    %35 = vector.broadcast %cst_15 : f32 to vector<2x128xf32>
    %36 = arith.addf %35, %34 : vector<2x128xf32>
    %37 = arith.divf %35, %36 : vector<2x128xf32>
    %38 = math.tanh %32 : vector<2x128xf32>
    %39 = vector.extract_strided_slice %37 {offsets = [0, 0], sizes = [2, 32], strides = [1, 1]} : vector<2x128xf32> to vector<2x32xf32>
    %40 = vector.extract_strided_slice %37 {offsets = [0, 32], sizes = [2, 32], strides = [1, 1]} : vector<2x128xf32> to vector<2x32xf32>
    %41 = vector.extract_strided_slice %38 {offsets = [0, 64], sizes = [2, 32], strides = [1, 1]} : vector<2x128xf32> to vector<2x32xf32>
    %42 = vector.extract_strided_slice %37 {offsets = [0, 96], sizes = [2, 32], strides = [1, 1]} : vector<2x128xf32> to vector<2x32xf32>
    %43 = arith.mulf %40, %27 : vector<2x32xf32>
    %44 = arith.mulf %39, %41 : vector<2x32xf32>
    %45 = arith.addf %43, %44 : vector<2x32xf32>
    %46 = math.tanh %45 : vector<2x32xf32>
    %47 = arith.mulf %42, %46 : vector<2x32xf32>
    %48 = vector.extract_strided_slice %9 {offsets = [4, 0], sizes = [2, 128], strides = [1, 1]} : vector<16x128xf32> to vector<2x128xf32>
    %cst_16 = arith.constant dense<0.000000e+00> : vector<2x128xf32>
    %49 = tpu.matmul %47, %4, %cst_16 {dimension_numbers = #tpu.dot_dimension_numbers<[1], [0], [0], [1], [0, 0, 1, 1], [], []>} : vector<2x32xf32>, vector<32x128xf32>, vector<2x128xf32> -> vector<2x128xf32>
    %50 = arith.addf %48, %49 : vector<2x128xf32>
    %51 = arith.negf %50 : vector<2x128xf32>
    %52 = math.exp %51 : vector<2x128xf32>
    %cst_17 = arith.constant 1.000000e+00 : f32
    %53 = vector.broadcast %cst_17 : f32 to vector<2x128xf32>
    %54 = arith.addf %53, %52 : vector<2x128xf32>
    %55 = arith.divf %53, %54 : vector<2x128xf32>
    %56 = math.tanh %50 : vector<2x128xf32>
    %57 = vector.extract_strided_slice %55 {offsets = [0, 0], sizes = [2, 32], strides = [1, 1]} : vector<2x128xf32> to vector<2x32xf32>
    %58 = vector.extract_strided_slice %55 {offsets = [0, 32], sizes = [2, 32], strides = [1, 1]} : vector<2x128xf32> to vector<2x32xf32>
    %59 = vector.extract_strided_slice %56 {offsets = [0, 64], sizes = [2, 32], strides = [1, 1]} : vector<2x128xf32> to vector<2x32xf32>
    %60 = vector.extract_strided_slice %55 {offsets = [0, 96], sizes = [2, 32], strides = [1, 1]} : vector<2x128xf32> to vector<2x32xf32>
    %61 = arith.mulf %58, %45 : vector<2x32xf32>
    %62 = arith.mulf %57, %59 : vector<2x32xf32>
    %63 = arith.addf %61, %62 : vector<2x32xf32>
    %64 = math.tanh %63 : vector<2x32xf32>
    %65 = arith.mulf %60, %64 : vector<2x32xf32>
    %66 = vector.extract_strided_slice %9 {offsets = [6, 0], sizes = [2, 128], strides = [1, 1]} : vector<16x128xf32> to vector<2x128xf32>
    %cst_18 = arith.constant dense<0.000000e+00> : vector<2x128xf32>
    %67 = tpu.matmul %65, %4, %cst_18 {dimension_numbers = #tpu.dot_dimension_numbers<[1], [0], [0], [1], [0, 0, 1, 1], [], []>} : vector<2x32xf32>, vector<32x128xf32>, vector<2x128xf32> -> vector<2x128xf32>
    %68 = arith.addf %66, %67 : vector<2x128xf32>
    %69 = arith.negf %68 : vector<2x128xf32>
    %70 = math.exp %69 : vector<2x128xf32>
    %cst_19 = arith.constant 1.000000e+00 : f32
    %71 = vector.broadcast %cst_19 : f32 to vector<2x128xf32>
    %72 = arith.addf %71, %70 : vector<2x128xf32>
    %73 = arith.divf %71, %72 : vector<2x128xf32>
    %74 = math.tanh %68 : vector<2x128xf32>
    %75 = vector.extract_strided_slice %73 {offsets = [0, 0], sizes = [2, 32], strides = [1, 1]} : vector<2x128xf32> to vector<2x32xf32>
    %76 = vector.extract_strided_slice %73 {offsets = [0, 32], sizes = [2, 32], strides = [1, 1]} : vector<2x128xf32> to vector<2x32xf32>
    %77 = vector.extract_strided_slice %74 {offsets = [0, 64], sizes = [2, 32], strides = [1, 1]} : vector<2x128xf32> to vector<2x32xf32>
    %78 = vector.extract_strided_slice %73 {offsets = [0, 96], sizes = [2, 32], strides = [1, 1]} : vector<2x128xf32> to vector<2x32xf32>
    %79 = arith.mulf %76, %63 : vector<2x32xf32>
    %80 = arith.mulf %75, %77 : vector<2x32xf32>
    %81 = arith.addf %79, %80 : vector<2x32xf32>
    %82 = math.tanh %81 : vector<2x32xf32>
    %83 = arith.mulf %78, %82 : vector<2x32xf32>
    %84 = vector.extract_strided_slice %9 {offsets = [8, 0], sizes = [2, 128], strides = [1, 1]} : vector<16x128xf32> to vector<2x128xf32>
    %cst_20 = arith.constant dense<0.000000e+00> : vector<2x128xf32>
    %85 = tpu.matmul %83, %4, %cst_20 {dimension_numbers = #tpu.dot_dimension_numbers<[1], [0], [0], [1], [0, 0, 1, 1], [], []>} : vector<2x32xf32>, vector<32x128xf32>, vector<2x128xf32> -> vector<2x128xf32>
    %86 = arith.addf %84, %85 : vector<2x128xf32>
    %87 = arith.negf %86 : vector<2x128xf32>
    %88 = math.exp %87 : vector<2x128xf32>
    %cst_21 = arith.constant 1.000000e+00 : f32
    %89 = vector.broadcast %cst_21 : f32 to vector<2x128xf32>
    %90 = arith.addf %89, %88 : vector<2x128xf32>
    %91 = arith.divf %89, %90 : vector<2x128xf32>
    %92 = math.tanh %86 : vector<2x128xf32>
    %93 = vector.extract_strided_slice %91 {offsets = [0, 0], sizes = [2, 32], strides = [1, 1]} : vector<2x128xf32> to vector<2x32xf32>
    %94 = vector.extract_strided_slice %91 {offsets = [0, 32], sizes = [2, 32], strides = [1, 1]} : vector<2x128xf32> to vector<2x32xf32>
    %95 = vector.extract_strided_slice %92 {offsets = [0, 64], sizes = [2, 32], strides = [1, 1]} : vector<2x128xf32> to vector<2x32xf32>
    %96 = vector.extract_strided_slice %91 {offsets = [0, 96], sizes = [2, 32], strides = [1, 1]} : vector<2x128xf32> to vector<2x32xf32>
    %97 = arith.mulf %94, %81 : vector<2x32xf32>
    %98 = arith.mulf %93, %95 : vector<2x32xf32>
    %99 = arith.addf %97, %98 : vector<2x32xf32>
    %100 = math.tanh %99 : vector<2x32xf32>
    %101 = arith.mulf %96, %100 : vector<2x32xf32>
    %102 = vector.extract_strided_slice %9 {offsets = [10, 0], sizes = [2, 128], strides = [1, 1]} : vector<16x128xf32> to vector<2x128xf32>
    %cst_22 = arith.constant dense<0.000000e+00> : vector<2x128xf32>
    %103 = tpu.matmul %101, %4, %cst_22 {dimension_numbers = #tpu.dot_dimension_numbers<[1], [0], [0], [1], [0, 0, 1, 1], [], []>} : vector<2x32xf32>, vector<32x128xf32>, vector<2x128xf32> -> vector<2x128xf32>
    %104 = arith.addf %102, %103 : vector<2x128xf32>
    %105 = arith.negf %104 : vector<2x128xf32>
    %106 = math.exp %105 : vector<2x128xf32>
    %cst_23 = arith.constant 1.000000e+00 : f32
    %107 = vector.broadcast %cst_23 : f32 to vector<2x128xf32>
    %108 = arith.addf %107, %106 : vector<2x128xf32>
    %109 = arith.divf %107, %108 : vector<2x128xf32>
    %110 = math.tanh %104 : vector<2x128xf32>
    %111 = vector.extract_strided_slice %109 {offsets = [0, 0], sizes = [2, 32], strides = [1, 1]} : vector<2x128xf32> to vector<2x32xf32>
    %112 = vector.extract_strided_slice %109 {offsets = [0, 32], sizes = [2, 32], strides = [1, 1]} : vector<2x128xf32> to vector<2x32xf32>
    %113 = vector.extract_strided_slice %110 {offsets = [0, 64], sizes = [2, 32], strides = [1, 1]} : vector<2x128xf32> to vector<2x32xf32>
    %114 = vector.extract_strided_slice %109 {offsets = [0, 96], sizes = [2, 32], strides = [1, 1]} : vector<2x128xf32> to vector<2x32xf32>
    %115 = arith.mulf %112, %99 : vector<2x32xf32>
    %116 = arith.mulf %111, %113 : vector<2x32xf32>
    %117 = arith.addf %115, %116 : vector<2x32xf32>
    %118 = math.tanh %117 : vector<2x32xf32>
    %119 = arith.mulf %114, %118 : vector<2x32xf32>
    %120 = vector.extract_strided_slice %9 {offsets = [12, 0], sizes = [2, 128], strides = [1, 1]} : vector<16x128xf32> to vector<2x128xf32>
    %cst_24 = arith.constant dense<0.000000e+00> : vector<2x128xf32>
    %121 = tpu.matmul %119, %4, %cst_24 {dimension_numbers = #tpu.dot_dimension_numbers<[1], [0], [0], [1], [0, 0, 1, 1], [], []>} : vector<2x32xf32>, vector<32x128xf32>, vector<2x128xf32> -> vector<2x128xf32>
    %122 = arith.addf %120, %121 : vector<2x128xf32>
    %123 = arith.negf %122 : vector<2x128xf32>
    %124 = math.exp %123 : vector<2x128xf32>
    %cst_25 = arith.constant 1.000000e+00 : f32
    %125 = vector.broadcast %cst_25 : f32 to vector<2x128xf32>
    %126 = arith.addf %125, %124 : vector<2x128xf32>
    %127 = arith.divf %125, %126 : vector<2x128xf32>
    %128 = math.tanh %122 : vector<2x128xf32>
    %129 = vector.extract_strided_slice %127 {offsets = [0, 0], sizes = [2, 32], strides = [1, 1]} : vector<2x128xf32> to vector<2x32xf32>
    %130 = vector.extract_strided_slice %127 {offsets = [0, 32], sizes = [2, 32], strides = [1, 1]} : vector<2x128xf32> to vector<2x32xf32>
    %131 = vector.extract_strided_slice %128 {offsets = [0, 64], sizes = [2, 32], strides = [1, 1]} : vector<2x128xf32> to vector<2x32xf32>
    %132 = vector.extract_strided_slice %127 {offsets = [0, 96], sizes = [2, 32], strides = [1, 1]} : vector<2x128xf32> to vector<2x32xf32>
    %133 = arith.mulf %130, %117 : vector<2x32xf32>
    %134 = arith.mulf %129, %131 : vector<2x32xf32>
    %135 = arith.addf %133, %134 : vector<2x32xf32>
    %136 = math.tanh %135 : vector<2x32xf32>
    %137 = arith.mulf %132, %136 : vector<2x32xf32>
    %138 = vector.extract_strided_slice %9 {offsets = [14, 0], sizes = [2, 128], strides = [1, 1]} : vector<16x128xf32> to vector<2x128xf32>
    %cst_26 = arith.constant dense<0.000000e+00> : vector<2x128xf32>
    %139 = tpu.matmul %137, %4, %cst_26 {dimension_numbers = #tpu.dot_dimension_numbers<[1], [0], [0], [1], [0, 0, 1, 1], [], []>} : vector<2x32xf32>, vector<32x128xf32>, vector<2x128xf32> -> vector<2x128xf32>
    %140 = arith.addf %138, %139 : vector<2x128xf32>
    %141 = arith.negf %140 : vector<2x128xf32>
    %142 = math.exp %141 : vector<2x128xf32>
    %cst_27 = arith.constant 1.000000e+00 : f32
    %143 = vector.broadcast %cst_27 : f32 to vector<2x128xf32>
    %144 = arith.addf %143, %142 : vector<2x128xf32>
    %145 = arith.divf %143, %144 : vector<2x128xf32>
    %146 = math.tanh %140 : vector<2x128xf32>
    %147 = vector.extract_strided_slice %145 {offsets = [0, 0], sizes = [2, 32], strides = [1, 1]} : vector<2x128xf32> to vector<2x32xf32>
    %148 = vector.extract_strided_slice %145 {offsets = [0, 32], sizes = [2, 32], strides = [1, 1]} : vector<2x128xf32> to vector<2x32xf32>
    %149 = vector.extract_strided_slice %146 {offsets = [0, 64], sizes = [2, 32], strides = [1, 1]} : vector<2x128xf32> to vector<2x32xf32>
    %150 = vector.extract_strided_slice %145 {offsets = [0, 96], sizes = [2, 32], strides = [1, 1]} : vector<2x128xf32> to vector<2x32xf32>
    %151 = arith.mulf %148, %135 : vector<2x32xf32>
    %152 = arith.mulf %147, %149 : vector<2x32xf32>
    %153 = arith.addf %151, %152 : vector<2x32xf32>
    %154 = math.tanh %153 : vector<2x32xf32>
    %155 = arith.mulf %150, %154 : vector<2x32xf32>
    %156 = tpu.concatenate %29, %47, %65, %83, %101, %119, %137, %155 in 0 : vector<2x32xf32>, vector<2x32xf32>, vector<2x32xf32>, vector<2x32xf32>, vector<2x32xf32>, vector<2x32xf32>, vector<2x32xf32>, vector<2x32xf32> -> vector<16x32xf32>
    %c1 = arith.constant 1 : index
    %c0_28 = arith.constant 0 : index
    %c0_29 = arith.constant 0 : index
    %157 = vector.load %arg2[%c1, %c0_28, %c0_29] : memref<3x32x128xf32, #tpu.memory_space<vmem>>, vector<1x32x128xf32>
    %158 = vector.shape_cast %157 : vector<1x32x128xf32> to vector<32x128xf32>
    %c1_30 = arith.constant 1 : index
    %c0_31 = arith.constant 0 : index
    %c0_32 = arith.constant 0 : index
    %159 = vector.load %arg3[%c1_30, %c0_31, %c0_32] : memref<3x32x128xf32, #tpu.memory_space<vmem>>, vector<1x32x128xf32>
    %160 = vector.shape_cast %159 : vector<1x32x128xf32> to vector<32x128xf32>
    %c1_33 = arith.constant 1 : index
    %c0_34 = arith.constant 0 : index
    %c0_35 = arith.constant 0 : index
    %161 = vector.load %arg4[%c1_33, %c0_34, %c0_35] : memref<3x1x128xf32, #tpu.memory_space<vmem>>, vector<1x1x128xf32>
    %162 = vector.shape_cast %161 : vector<1x1x128xf32> to vector<1x128xf32>
    %cst_36 = arith.constant dense<0.000000e+00> : vector<16x128xf32>
    %163 = tpu.matmul %156, %158, %cst_36 {dimension_numbers = #tpu.dot_dimension_numbers<[1], [0], [0], [1], [0, 0, 1, 1], [], []>} : vector<16x32xf32>, vector<32x128xf32>, vector<16x128xf32> -> vector<16x128xf32>
    %164 = vector.broadcast %162 : vector<1x128xf32> to vector<16x128xf32>
    %165 = arith.addf %163, %164 : vector<16x128xf32>
    %cst_37 = arith.constant 0.000000e+00 : f32
    %166 = vector.broadcast %cst_37 : f32 to vector<2x32xf32>
    %cst_38 = arith.constant 0.000000e+00 : f32
    %167 = vector.broadcast %cst_38 : f32 to vector<2x32xf32>
    %168 = vector.extract_strided_slice %165 {offsets = [0, 0], sizes = [2, 128], strides = [1, 1]} : vector<16x128xf32> to vector<2x128xf32>
    %cst_39 = arith.constant dense<0.000000e+00> : vector<2x128xf32>
    %169 = tpu.matmul %166, %160, %cst_39 {dimension_numbers = #tpu.dot_dimension_numbers<[1], [0], [0], [1], [0, 0, 1, 1], [], []>} : vector<2x32xf32>, vector<32x128xf32>, vector<2x128xf32> -> vector<2x128xf32>
    %170 = arith.addf %168, %169 : vector<2x128xf32>
    %171 = arith.negf %170 : vector<2x128xf32>
    %172 = math.exp %171 : vector<2x128xf32>
    %cst_40 = arith.constant 1.000000e+00 : f32
    %173 = vector.broadcast %cst_40 : f32 to vector<2x128xf32>
    %174 = arith.addf %173, %172 : vector<2x128xf32>
    %175 = arith.divf %173, %174 : vector<2x128xf32>
    %176 = math.tanh %170 : vector<2x128xf32>
    %177 = vector.extract_strided_slice %175 {offsets = [0, 0], sizes = [2, 32], strides = [1, 1]} : vector<2x128xf32> to vector<2x32xf32>
    %178 = vector.extract_strided_slice %175 {offsets = [0, 32], sizes = [2, 32], strides = [1, 1]} : vector<2x128xf32> to vector<2x32xf32>
    %179 = vector.extract_strided_slice %176 {offsets = [0, 64], sizes = [2, 32], strides = [1, 1]} : vector<2x128xf32> to vector<2x32xf32>
    %180 = vector.extract_strided_slice %175 {offsets = [0, 96], sizes = [2, 32], strides = [1, 1]} : vector<2x128xf32> to vector<2x32xf32>
    %181 = arith.mulf %178, %167 : vector<2x32xf32>
    %182 = arith.mulf %177, %179 : vector<2x32xf32>
    %183 = arith.addf %181, %182 : vector<2x32xf32>
    %184 = math.tanh %183 : vector<2x32xf32>
    %185 = arith.mulf %180, %184 : vector<2x32xf32>
    %186 = vector.extract_strided_slice %165 {offsets = [2, 0], sizes = [2, 128], strides = [1, 1]} : vector<16x128xf32> to vector<2x128xf32>
    %cst_41 = arith.constant dense<0.000000e+00> : vector<2x128xf32>
    %187 = tpu.matmul %185, %160, %cst_41 {dimension_numbers = #tpu.dot_dimension_numbers<[1], [0], [0], [1], [0, 0, 1, 1], [], []>} : vector<2x32xf32>, vector<32x128xf32>, vector<2x128xf32> -> vector<2x128xf32>
    %188 = arith.addf %186, %187 : vector<2x128xf32>
    %189 = arith.negf %188 : vector<2x128xf32>
    %190 = math.exp %189 : vector<2x128xf32>
    %cst_42 = arith.constant 1.000000e+00 : f32
    %191 = vector.broadcast %cst_42 : f32 to vector<2x128xf32>
    %192 = arith.addf %191, %190 : vector<2x128xf32>
    %193 = arith.divf %191, %192 : vector<2x128xf32>
    %194 = math.tanh %188 : vector<2x128xf32>
    %195 = vector.extract_strided_slice %193 {offsets = [0, 0], sizes = [2, 32], strides = [1, 1]} : vector<2x128xf32> to vector<2x32xf32>
    %196 = vector.extract_strided_slice %193 {offsets = [0, 32], sizes = [2, 32], strides = [1, 1]} : vector<2x128xf32> to vector<2x32xf32>
    %197 = vector.extract_strided_slice %194 {offsets = [0, 64], sizes = [2, 32], strides = [1, 1]} : vector<2x128xf32> to vector<2x32xf32>
    %198 = vector.extract_strided_slice %193 {offsets = [0, 96], sizes = [2, 32], strides = [1, 1]} : vector<2x128xf32> to vector<2x32xf32>
    %199 = arith.mulf %196, %183 : vector<2x32xf32>
    %200 = arith.mulf %195, %197 : vector<2x32xf32>
    %201 = arith.addf %199, %200 : vector<2x32xf32>
    %202 = math.tanh %201 : vector<2x32xf32>
    %203 = arith.mulf %198, %202 : vector<2x32xf32>
    %204 = vector.extract_strided_slice %165 {offsets = [4, 0], sizes = [2, 128], strides = [1, 1]} : vector<16x128xf32> to vector<2x128xf32>
    %cst_43 = arith.constant dense<0.000000e+00> : vector<2x128xf32>
    %205 = tpu.matmul %203, %160, %cst_43 {dimension_numbers = #tpu.dot_dimension_numbers<[1], [0], [0], [1], [0, 0, 1, 1], [], []>} : vector<2x32xf32>, vector<32x128xf32>, vector<2x128xf32> -> vector<2x128xf32>
    %206 = arith.addf %204, %205 : vector<2x128xf32>
    %207 = arith.negf %206 : vector<2x128xf32>
    %208 = math.exp %207 : vector<2x128xf32>
    %cst_44 = arith.constant 1.000000e+00 : f32
    %209 = vector.broadcast %cst_44 : f32 to vector<2x128xf32>
    %210 = arith.addf %209, %208 : vector<2x128xf32>
    %211 = arith.divf %209, %210 : vector<2x128xf32>
    %212 = math.tanh %206 : vector<2x128xf32>
    %213 = vector.extract_strided_slice %211 {offsets = [0, 0], sizes = [2, 32], strides = [1, 1]} : vector<2x128xf32> to vector<2x32xf32>
    %214 = vector.extract_strided_slice %211 {offsets = [0, 32], sizes = [2, 32], strides = [1, 1]} : vector<2x128xf32> to vector<2x32xf32>
    %215 = vector.extract_strided_slice %212 {offsets = [0, 64], sizes = [2, 32], strides = [1, 1]} : vector<2x128xf32> to vector<2x32xf32>
    %216 = vector.extract_strided_slice %211 {offsets = [0, 96], sizes = [2, 32], strides = [1, 1]} : vector<2x128xf32> to vector<2x32xf32>
    %217 = arith.mulf %214, %201 : vector<2x32xf32>
    %218 = arith.mulf %213, %215 : vector<2x32xf32>
    %219 = arith.addf %217, %218 : vector<2x32xf32>
    %220 = math.tanh %219 : vector<2x32xf32>
    %221 = arith.mulf %216, %220 : vector<2x32xf32>
    %222 = vector.extract_strided_slice %165 {offsets = [6, 0], sizes = [2, 128], strides = [1, 1]} : vector<16x128xf32> to vector<2x128xf32>
    %cst_45 = arith.constant dense<0.000000e+00> : vector<2x128xf32>
    %223 = tpu.matmul %221, %160, %cst_45 {dimension_numbers = #tpu.dot_dimension_numbers<[1], [0], [0], [1], [0, 0, 1, 1], [], []>} : vector<2x32xf32>, vector<32x128xf32>, vector<2x128xf32> -> vector<2x128xf32>
    %224 = arith.addf %222, %223 : vector<2x128xf32>
    %225 = arith.negf %224 : vector<2x128xf32>
    %226 = math.exp %225 : vector<2x128xf32>
    %cst_46 = arith.constant 1.000000e+00 : f32
    %227 = vector.broadcast %cst_46 : f32 to vector<2x128xf32>
    %228 = arith.addf %227, %226 : vector<2x128xf32>
    %229 = arith.divf %227, %228 : vector<2x128xf32>
    %230 = math.tanh %224 : vector<2x128xf32>
    %231 = vector.extract_strided_slice %229 {offsets = [0, 0], sizes = [2, 32], strides = [1, 1]} : vector<2x128xf32> to vector<2x32xf32>
    %232 = vector.extract_strided_slice %229 {offsets = [0, 32], sizes = [2, 32], strides = [1, 1]} : vector<2x128xf32> to vector<2x32xf32>
    %233 = vector.extract_strided_slice %230 {offsets = [0, 64], sizes = [2, 32], strides = [1, 1]} : vector<2x128xf32> to vector<2x32xf32>
    %234 = vector.extract_strided_slice %229 {offsets = [0, 96], sizes = [2, 32], strides = [1, 1]} : vector<2x128xf32> to vector<2x32xf32>
    %235 = arith.mulf %232, %219 : vector<2x32xf32>
    %236 = arith.mulf %231, %233 : vector<2x32xf32>
    %237 = arith.addf %235, %236 : vector<2x32xf32>
    %238 = math.tanh %237 : vector<2x32xf32>
    %239 = arith.mulf %234, %238 : vector<2x32xf32>
    %240 = vector.extract_strided_slice %165 {offsets = [8, 0], sizes = [2, 128], strides = [1, 1]} : vector<16x128xf32> to vector<2x128xf32>
    %cst_47 = arith.constant dense<0.000000e+00> : vector<2x128xf32>
    %241 = tpu.matmul %239, %160, %cst_47 {dimension_numbers = #tpu.dot_dimension_numbers<[1], [0], [0], [1], [0, 0, 1, 1], [], []>} : vector<2x32xf32>, vector<32x128xf32>, vector<2x128xf32> -> vector<2x128xf32>
    %242 = arith.addf %240, %241 : vector<2x128xf32>
    %243 = arith.negf %242 : vector<2x128xf32>
    %244 = math.exp %243 : vector<2x128xf32>
    %cst_48 = arith.constant 1.000000e+00 : f32
    %245 = vector.broadcast %cst_48 : f32 to vector<2x128xf32>
    %246 = arith.addf %245, %244 : vector<2x128xf32>
    %247 = arith.divf %245, %246 : vector<2x128xf32>
    %248 = math.tanh %242 : vector<2x128xf32>
    %249 = vector.extract_strided_slice %247 {offsets = [0, 0], sizes = [2, 32], strides = [1, 1]} : vector<2x128xf32> to vector<2x32xf32>
    %250 = vector.extract_strided_slice %247 {offsets = [0, 32], sizes = [2, 32], strides = [1, 1]} : vector<2x128xf32> to vector<2x32xf32>
    %251 = vector.extract_strided_slice %248 {offsets = [0, 64], sizes = [2, 32], strides = [1, 1]} : vector<2x128xf32> to vector<2x32xf32>
    %252 = vector.extract_strided_slice %247 {offsets = [0, 96], sizes = [2, 32], strides = [1, 1]} : vector<2x128xf32> to vector<2x32xf32>
    %253 = arith.mulf %250, %237 : vector<2x32xf32>
    %254 = arith.mulf %249, %251 : vector<2x32xf32>
    %255 = arith.addf %253, %254 : vector<2x32xf32>
    %256 = math.tanh %255 : vector<2x32xf32>
    %257 = arith.mulf %252, %256 : vector<2x32xf32>
    %258 = vector.extract_strided_slice %165 {offsets = [10, 0], sizes = [2, 128], strides = [1, 1]} : vector<16x128xf32> to vector<2x128xf32>
    %cst_49 = arith.constant dense<0.000000e+00> : vector<2x128xf32>
    %259 = tpu.matmul %257, %160, %cst_49 {dimension_numbers = #tpu.dot_dimension_numbers<[1], [0], [0], [1], [0, 0, 1, 1], [], []>} : vector<2x32xf32>, vector<32x128xf32>, vector<2x128xf32> -> vector<2x128xf32>
    %260 = arith.addf %258, %259 : vector<2x128xf32>
    %261 = arith.negf %260 : vector<2x128xf32>
    %262 = math.exp %261 : vector<2x128xf32>
    %cst_50 = arith.constant 1.000000e+00 : f32
    %263 = vector.broadcast %cst_50 : f32 to vector<2x128xf32>
    %264 = arith.addf %263, %262 : vector<2x128xf32>
    %265 = arith.divf %263, %264 : vector<2x128xf32>
    %266 = math.tanh %260 : vector<2x128xf32>
    %267 = vector.extract_strided_slice %265 {offsets = [0, 0], sizes = [2, 32], strides = [1, 1]} : vector<2x128xf32> to vector<2x32xf32>
    %268 = vector.extract_strided_slice %265 {offsets = [0, 32], sizes = [2, 32], strides = [1, 1]} : vector<2x128xf32> to vector<2x32xf32>
    %269 = vector.extract_strided_slice %266 {offsets = [0, 64], sizes = [2, 32], strides = [1, 1]} : vector<2x128xf32> to vector<2x32xf32>
    %270 = vector.extract_strided_slice %265 {offsets = [0, 96], sizes = [2, 32], strides = [1, 1]} : vector<2x128xf32> to vector<2x32xf32>
    %271 = arith.mulf %268, %255 : vector<2x32xf32>
    %272 = arith.mulf %267, %269 : vector<2x32xf32>
    %273 = arith.addf %271, %272 : vector<2x32xf32>
    %274 = math.tanh %273 : vector<2x32xf32>
    %275 = arith.mulf %270, %274 : vector<2x32xf32>
    %276 = vector.extract_strided_slice %165 {offsets = [12, 0], sizes = [2, 128], strides = [1, 1]} : vector<16x128xf32> to vector<2x128xf32>
    %cst_51 = arith.constant dense<0.000000e+00> : vector<2x128xf32>
    %277 = tpu.matmul %275, %160, %cst_51 {dimension_numbers = #tpu.dot_dimension_numbers<[1], [0], [0], [1], [0, 0, 1, 1], [], []>} : vector<2x32xf32>, vector<32x128xf32>, vector<2x128xf32> -> vector<2x128xf32>
    %278 = arith.addf %276, %277 : vector<2x128xf32>
    %279 = arith.negf %278 : vector<2x128xf32>
    %280 = math.exp %279 : vector<2x128xf32>
    %cst_52 = arith.constant 1.000000e+00 : f32
    %281 = vector.broadcast %cst_52 : f32 to vector<2x128xf32>
    %282 = arith.addf %281, %280 : vector<2x128xf32>
    %283 = arith.divf %281, %282 : vector<2x128xf32>
    %284 = math.tanh %278 : vector<2x128xf32>
    %285 = vector.extract_strided_slice %283 {offsets = [0, 0], sizes = [2, 32], strides = [1, 1]} : vector<2x128xf32> to vector<2x32xf32>
    %286 = vector.extract_strided_slice %283 {offsets = [0, 32], sizes = [2, 32], strides = [1, 1]} : vector<2x128xf32> to vector<2x32xf32>
    %287 = vector.extract_strided_slice %284 {offsets = [0, 64], sizes = [2, 32], strides = [1, 1]} : vector<2x128xf32> to vector<2x32xf32>
    %288 = vector.extract_strided_slice %283 {offsets = [0, 96], sizes = [2, 32], strides = [1, 1]} : vector<2x128xf32> to vector<2x32xf32>
    %289 = arith.mulf %286, %273 : vector<2x32xf32>
    %290 = arith.mulf %285, %287 : vector<2x32xf32>
    %291 = arith.addf %289, %290 : vector<2x32xf32>
    %292 = math.tanh %291 : vector<2x32xf32>
    %293 = arith.mulf %288, %292 : vector<2x32xf32>
    %294 = vector.extract_strided_slice %165 {offsets = [14, 0], sizes = [2, 128], strides = [1, 1]} : vector<16x128xf32> to vector<2x128xf32>
    %cst_53 = arith.constant dense<0.000000e+00> : vector<2x128xf32>
    %295 = tpu.matmul %293, %160, %cst_53 {dimension_numbers = #tpu.dot_dimension_numbers<[1], [0], [0], [1], [0, 0, 1, 1], [], []>} : vector<2x32xf32>, vector<32x128xf32>, vector<2x128xf32> -> vector<2x128xf32>
    %296 = arith.addf %294, %295 : vector<2x128xf32>
    %297 = arith.negf %296 : vector<2x128xf32>
    %298 = math.exp %297 : vector<2x128xf32>
    %cst_54 = arith.constant 1.000000e+00 : f32
    %299 = vector.broadcast %cst_54 : f32 to vector<2x128xf32>
    %300 = arith.addf %299, %298 : vector<2x128xf32>
    %301 = arith.divf %299, %300 : vector<2x128xf32>
    %302 = math.tanh %296 : vector<2x128xf32>
    %303 = vector.extract_strided_slice %301 {offsets = [0, 0], sizes = [2, 32], strides = [1, 1]} : vector<2x128xf32> to vector<2x32xf32>
    %304 = vector.extract_strided_slice %301 {offsets = [0, 32], sizes = [2, 32], strides = [1, 1]} : vector<2x128xf32> to vector<2x32xf32>
    %305 = vector.extract_strided_slice %302 {offsets = [0, 64], sizes = [2, 32], strides = [1, 1]} : vector<2x128xf32> to vector<2x32xf32>
    %306 = vector.extract_strided_slice %301 {offsets = [0, 96], sizes = [2, 32], strides = [1, 1]} : vector<2x128xf32> to vector<2x32xf32>
    %307 = arith.mulf %304, %291 : vector<2x32xf32>
    %308 = arith.mulf %303, %305 : vector<2x32xf32>
    %309 = arith.addf %307, %308 : vector<2x32xf32>
    %310 = math.tanh %309 : vector<2x32xf32>
    %311 = arith.mulf %306, %310 : vector<2x32xf32>
    %312 = tpu.concatenate %185, %203, %221, %239, %257, %275, %293, %311 in 0 : vector<2x32xf32>, vector<2x32xf32>, vector<2x32xf32>, vector<2x32xf32>, vector<2x32xf32>, vector<2x32xf32>, vector<2x32xf32>, vector<2x32xf32> -> vector<16x32xf32>
    %c2 = arith.constant 2 : index
    %c0_55 = arith.constant 0 : index
    %c0_56 = arith.constant 0 : index
    %313 = vector.load %arg2[%c2, %c0_55, %c0_56] : memref<3x32x128xf32, #tpu.memory_space<vmem>>, vector<1x32x128xf32>
    %314 = vector.shape_cast %313 : vector<1x32x128xf32> to vector<32x128xf32>
    %c2_57 = arith.constant 2 : index
    %c0_58 = arith.constant 0 : index
    %c0_59 = arith.constant 0 : index
    %315 = vector.load %arg3[%c2_57, %c0_58, %c0_59] : memref<3x32x128xf32, #tpu.memory_space<vmem>>, vector<1x32x128xf32>
    %316 = vector.shape_cast %315 : vector<1x32x128xf32> to vector<32x128xf32>
    %c2_60 = arith.constant 2 : index
    %c0_61 = arith.constant 0 : index
    %c0_62 = arith.constant 0 : index
    %317 = vector.load %arg4[%c2_60, %c0_61, %c0_62] : memref<3x1x128xf32, #tpu.memory_space<vmem>>, vector<1x1x128xf32>
    %318 = vector.shape_cast %317 : vector<1x1x128xf32> to vector<1x128xf32>
    %cst_63 = arith.constant dense<0.000000e+00> : vector<16x128xf32>
    %319 = tpu.matmul %312, %314, %cst_63 {dimension_numbers = #tpu.dot_dimension_numbers<[1], [0], [0], [1], [0, 0, 1, 1], [], []>} : vector<16x32xf32>, vector<32x128xf32>, vector<16x128xf32> -> vector<16x128xf32>
    %320 = vector.broadcast %318 : vector<1x128xf32> to vector<16x128xf32>
    %321 = arith.addf %319, %320 : vector<16x128xf32>
    %cst_64 = arith.constant 0.000000e+00 : f32
    %322 = vector.broadcast %cst_64 : f32 to vector<2x32xf32>
    %cst_65 = arith.constant 0.000000e+00 : f32
    %323 = vector.broadcast %cst_65 : f32 to vector<2x32xf32>
    %324 = vector.extract_strided_slice %321 {offsets = [0, 0], sizes = [2, 128], strides = [1, 1]} : vector<16x128xf32> to vector<2x128xf32>
    %cst_66 = arith.constant dense<0.000000e+00> : vector<2x128xf32>
    %325 = tpu.matmul %322, %316, %cst_66 {dimension_numbers = #tpu.dot_dimension_numbers<[1], [0], [0], [1], [0, 0, 1, 1], [], []>} : vector<2x32xf32>, vector<32x128xf32>, vector<2x128xf32> -> vector<2x128xf32>
    %326 = arith.addf %324, %325 : vector<2x128xf32>
    %327 = arith.negf %326 : vector<2x128xf32>
    %328 = math.exp %327 : vector<2x128xf32>
    %cst_67 = arith.constant 1.000000e+00 : f32
    %329 = vector.broadcast %cst_67 : f32 to vector<2x128xf32>
    %330 = arith.addf %329, %328 : vector<2x128xf32>
    %331 = arith.divf %329, %330 : vector<2x128xf32>
    %332 = math.tanh %326 : vector<2x128xf32>
    %333 = vector.extract_strided_slice %331 {offsets = [0, 0], sizes = [2, 32], strides = [1, 1]} : vector<2x128xf32> to vector<2x32xf32>
    %334 = vector.extract_strided_slice %331 {offsets = [0, 32], sizes = [2, 32], strides = [1, 1]} : vector<2x128xf32> to vector<2x32xf32>
    %335 = vector.extract_strided_slice %332 {offsets = [0, 64], sizes = [2, 32], strides = [1, 1]} : vector<2x128xf32> to vector<2x32xf32>
    %336 = vector.extract_strided_slice %331 {offsets = [0, 96], sizes = [2, 32], strides = [1, 1]} : vector<2x128xf32> to vector<2x32xf32>
    %337 = arith.mulf %334, %323 : vector<2x32xf32>
    %338 = arith.mulf %333, %335 : vector<2x32xf32>
    %339 = arith.addf %337, %338 : vector<2x32xf32>
    %340 = math.tanh %339 : vector<2x32xf32>
    %341 = arith.mulf %336, %340 : vector<2x32xf32>
    %342 = vector.extract_strided_slice %321 {offsets = [2, 0], sizes = [2, 128], strides = [1, 1]} : vector<16x128xf32> to vector<2x128xf32>
    %cst_68 = arith.constant dense<0.000000e+00> : vector<2x128xf32>
    %343 = tpu.matmul %341, %316, %cst_68 {dimension_numbers = #tpu.dot_dimension_numbers<[1], [0], [0], [1], [0, 0, 1, 1], [], []>} : vector<2x32xf32>, vector<32x128xf32>, vector<2x128xf32> -> vector<2x128xf32>
    %344 = arith.addf %342, %343 : vector<2x128xf32>
    %345 = arith.negf %344 : vector<2x128xf32>
    %346 = math.exp %345 : vector<2x128xf32>
    %cst_69 = arith.constant 1.000000e+00 : f32
    %347 = vector.broadcast %cst_69 : f32 to vector<2x128xf32>
    %348 = arith.addf %347, %346 : vector<2x128xf32>
    %349 = arith.divf %347, %348 : vector<2x128xf32>
    %350 = math.tanh %344 : vector<2x128xf32>
    %351 = vector.extract_strided_slice %349 {offsets = [0, 0], sizes = [2, 32], strides = [1, 1]} : vector<2x128xf32> to vector<2x32xf32>
    %352 = vector.extract_strided_slice %349 {offsets = [0, 32], sizes = [2, 32], strides = [1, 1]} : vector<2x128xf32> to vector<2x32xf32>
    %353 = vector.extract_strided_slice %350 {offsets = [0, 64], sizes = [2, 32], strides = [1, 1]} : vector<2x128xf32> to vector<2x32xf32>
    %354 = vector.extract_strided_slice %349 {offsets = [0, 96], sizes = [2, 32], strides = [1, 1]} : vector<2x128xf32> to vector<2x32xf32>
    %355 = arith.mulf %352, %339 : vector<2x32xf32>
    %356 = arith.mulf %351, %353 : vector<2x32xf32>
    %357 = arith.addf %355, %356 : vector<2x32xf32>
    %358 = math.tanh %357 : vector<2x32xf32>
    %359 = arith.mulf %354, %358 : vector<2x32xf32>
    %360 = vector.extract_strided_slice %321 {offsets = [4, 0], sizes = [2, 128], strides = [1, 1]} : vector<16x128xf32> to vector<2x128xf32>
    %cst_70 = arith.constant dense<0.000000e+00> : vector<2x128xf32>
    %361 = tpu.matmul %359, %316, %cst_70 {dimension_numbers = #tpu.dot_dimension_numbers<[1], [0], [0], [1], [0, 0, 1, 1], [], []>} : vector<2x32xf32>, vector<32x128xf32>, vector<2x128xf32> -> vector<2x128xf32>
    %362 = arith.addf %360, %361 : vector<2x128xf32>
    %363 = arith.negf %362 : vector<2x128xf32>
    %364 = math.exp %363 : vector<2x128xf32>
    %cst_71 = arith.constant 1.000000e+00 : f32
    %365 = vector.broadcast %cst_71 : f32 to vector<2x128xf32>
    %366 = arith.addf %365, %364 : vector<2x128xf32>
    %367 = arith.divf %365, %366 : vector<2x128xf32>
    %368 = math.tanh %362 : vector<2x128xf32>
    %369 = vector.extract_strided_slice %367 {offsets = [0, 0], sizes = [2, 32], strides = [1, 1]} : vector<2x128xf32> to vector<2x32xf32>
    %370 = vector.extract_strided_slice %367 {offsets = [0, 32], sizes = [2, 32], strides = [1, 1]} : vector<2x128xf32> to vector<2x32xf32>
    %371 = vector.extract_strided_slice %368 {offsets = [0, 64], sizes = [2, 32], strides = [1, 1]} : vector<2x128xf32> to vector<2x32xf32>
    %372 = vector.extract_strided_slice %367 {offsets = [0, 96], sizes = [2, 32], strides = [1, 1]} : vector<2x128xf32> to vector<2x32xf32>
    %373 = arith.mulf %370, %357 : vector<2x32xf32>
    %374 = arith.mulf %369, %371 : vector<2x32xf32>
    %375 = arith.addf %373, %374 : vector<2x32xf32>
    %376 = math.tanh %375 : vector<2x32xf32>
    %377 = arith.mulf %372, %376 : vector<2x32xf32>
    %378 = vector.extract_strided_slice %321 {offsets = [6, 0], sizes = [2, 128], strides = [1, 1]} : vector<16x128xf32> to vector<2x128xf32>
    %cst_72 = arith.constant dense<0.000000e+00> : vector<2x128xf32>
    %379 = tpu.matmul %377, %316, %cst_72 {dimension_numbers = #tpu.dot_dimension_numbers<[1], [0], [0], [1], [0, 0, 1, 1], [], []>} : vector<2x32xf32>, vector<32x128xf32>, vector<2x128xf32> -> vector<2x128xf32>
    %380 = arith.addf %378, %379 : vector<2x128xf32>
    %381 = arith.negf %380 : vector<2x128xf32>
    %382 = math.exp %381 : vector<2x128xf32>
    %cst_73 = arith.constant 1.000000e+00 : f32
    %383 = vector.broadcast %cst_73 : f32 to vector<2x128xf32>
    %384 = arith.addf %383, %382 : vector<2x128xf32>
    %385 = arith.divf %383, %384 : vector<2x128xf32>
    %386 = math.tanh %380 : vector<2x128xf32>
    %387 = vector.extract_strided_slice %385 {offsets = [0, 0], sizes = [2, 32], strides = [1, 1]} : vector<2x128xf32> to vector<2x32xf32>
    %388 = vector.extract_strided_slice %385 {offsets = [0, 32], sizes = [2, 32], strides = [1, 1]} : vector<2x128xf32> to vector<2x32xf32>
    %389 = vector.extract_strided_slice %386 {offsets = [0, 64], sizes = [2, 32], strides = [1, 1]} : vector<2x128xf32> to vector<2x32xf32>
    %390 = vector.extract_strided_slice %385 {offsets = [0, 96], sizes = [2, 32], strides = [1, 1]} : vector<2x128xf32> to vector<2x32xf32>
    %391 = arith.mulf %388, %375 : vector<2x32xf32>
    %392 = arith.mulf %387, %389 : vector<2x32xf32>
    %393 = arith.addf %391, %392 : vector<2x32xf32>
    %394 = math.tanh %393 : vector<2x32xf32>
    %395 = arith.mulf %390, %394 : vector<2x32xf32>
    %396 = vector.extract_strided_slice %321 {offsets = [8, 0], sizes = [2, 128], strides = [1, 1]} : vector<16x128xf32> to vector<2x128xf32>
    %cst_74 = arith.constant dense<0.000000e+00> : vector<2x128xf32>
    %397 = tpu.matmul %395, %316, %cst_74 {dimension_numbers = #tpu.dot_dimension_numbers<[1], [0], [0], [1], [0, 0, 1, 1], [], []>} : vector<2x32xf32>, vector<32x128xf32>, vector<2x128xf32> -> vector<2x128xf32>
    %398 = arith.addf %396, %397 : vector<2x128xf32>
    %399 = arith.negf %398 : vector<2x128xf32>
    %400 = math.exp %399 : vector<2x128xf32>
    %cst_75 = arith.constant 1.000000e+00 : f32
    %401 = vector.broadcast %cst_75 : f32 to vector<2x128xf32>
    %402 = arith.addf %401, %400 : vector<2x128xf32>
    %403 = arith.divf %401, %402 : vector<2x128xf32>
    %404 = math.tanh %398 : vector<2x128xf32>
    %405 = vector.extract_strided_slice %403 {offsets = [0, 0], sizes = [2, 32], strides = [1, 1]} : vector<2x128xf32> to vector<2x32xf32>
    %406 = vector.extract_strided_slice %403 {offsets = [0, 32], sizes = [2, 32], strides = [1, 1]} : vector<2x128xf32> to vector<2x32xf32>
    %407 = vector.extract_strided_slice %404 {offsets = [0, 64], sizes = [2, 32], strides = [1, 1]} : vector<2x128xf32> to vector<2x32xf32>
    %408 = vector.extract_strided_slice %403 {offsets = [0, 96], sizes = [2, 32], strides = [1, 1]} : vector<2x128xf32> to vector<2x32xf32>
    %409 = arith.mulf %406, %393 : vector<2x32xf32>
    %410 = arith.mulf %405, %407 : vector<2x32xf32>
    %411 = arith.addf %409, %410 : vector<2x32xf32>
    %412 = math.tanh %411 : vector<2x32xf32>
    %413 = arith.mulf %408, %412 : vector<2x32xf32>
    %414 = vector.extract_strided_slice %321 {offsets = [10, 0], sizes = [2, 128], strides = [1, 1]} : vector<16x128xf32> to vector<2x128xf32>
    %cst_76 = arith.constant dense<0.000000e+00> : vector<2x128xf32>
    %415 = tpu.matmul %413, %316, %cst_76 {dimension_numbers = #tpu.dot_dimension_numbers<[1], [0], [0], [1], [0, 0, 1, 1], [], []>} : vector<2x32xf32>, vector<32x128xf32>, vector<2x128xf32> -> vector<2x128xf32>
    %416 = arith.addf %414, %415 : vector<2x128xf32>
    %417 = arith.negf %416 : vector<2x128xf32>
    %418 = math.exp %417 : vector<2x128xf32>
    %cst_77 = arith.constant 1.000000e+00 : f32
    %419 = vector.broadcast %cst_77 : f32 to vector<2x128xf32>
    %420 = arith.addf %419, %418 : vector<2x128xf32>
    %421 = arith.divf %419, %420 : vector<2x128xf32>
    %422 = math.tanh %416 : vector<2x128xf32>
    %423 = vector.extract_strided_slice %421 {offsets = [0, 0], sizes = [2, 32], strides = [1, 1]} : vector<2x128xf32> to vector<2x32xf32>
    %424 = vector.extract_strided_slice %421 {offsets = [0, 32], sizes = [2, 32], strides = [1, 1]} : vector<2x128xf32> to vector<2x32xf32>
    %425 = vector.extract_strided_slice %422 {offsets = [0, 64], sizes = [2, 32], strides = [1, 1]} : vector<2x128xf32> to vector<2x32xf32>
    %426 = vector.extract_strided_slice %421 {offsets = [0, 96], sizes = [2, 32], strides = [1, 1]} : vector<2x128xf32> to vector<2x32xf32>
    %427 = arith.mulf %424, %411 : vector<2x32xf32>
    %428 = arith.mulf %423, %425 : vector<2x32xf32>
    %429 = arith.addf %427, %428 : vector<2x32xf32>
    %430 = math.tanh %429 : vector<2x32xf32>
    %431 = arith.mulf %426, %430 : vector<2x32xf32>
    %432 = vector.extract_strided_slice %321 {offsets = [12, 0], sizes = [2, 128], strides = [1, 1]} : vector<16x128xf32> to vector<2x128xf32>
    %cst_78 = arith.constant dense<0.000000e+00> : vector<2x128xf32>
    %433 = tpu.matmul %431, %316, %cst_78 {dimension_numbers = #tpu.dot_dimension_numbers<[1], [0], [0], [1], [0, 0, 1, 1], [], []>} : vector<2x32xf32>, vector<32x128xf32>, vector<2x128xf32> -> vector<2x128xf32>
    %434 = arith.addf %432, %433 : vector<2x128xf32>
    %435 = arith.negf %434 : vector<2x128xf32>
    %436 = math.exp %435 : vector<2x128xf32>
    %cst_79 = arith.constant 1.000000e+00 : f32
    %437 = vector.broadcast %cst_79 : f32 to vector<2x128xf32>
    %438 = arith.addf %437, %436 : vector<2x128xf32>
    %439 = arith.divf %437, %438 : vector<2x128xf32>
    %440 = math.tanh %434 : vector<2x128xf32>
    %441 = vector.extract_strided_slice %439 {offsets = [0, 0], sizes = [2, 32], strides = [1, 1]} : vector<2x128xf32> to vector<2x32xf32>
    %442 = vector.extract_strided_slice %439 {offsets = [0, 32], sizes = [2, 32], strides = [1, 1]} : vector<2x128xf32> to vector<2x32xf32>
    %443 = vector.extract_strided_slice %440 {offsets = [0, 64], sizes = [2, 32], strides = [1, 1]} : vector<2x128xf32> to vector<2x32xf32>
    %444 = vector.extract_strided_slice %439 {offsets = [0, 96], sizes = [2, 32], strides = [1, 1]} : vector<2x128xf32> to vector<2x32xf32>
    %445 = arith.mulf %442, %429 : vector<2x32xf32>
    %446 = arith.mulf %441, %443 : vector<2x32xf32>
    %447 = arith.addf %445, %446 : vector<2x32xf32>
    %448 = math.tanh %447 : vector<2x32xf32>
    %449 = arith.mulf %444, %448 : vector<2x32xf32>
    %450 = vector.extract_strided_slice %321 {offsets = [14, 0], sizes = [2, 128], strides = [1, 1]} : vector<16x128xf32> to vector<2x128xf32>
    %cst_80 = arith.constant dense<0.000000e+00> : vector<2x128xf32>
    %451 = tpu.matmul %449, %316, %cst_80 {dimension_numbers = #tpu.dot_dimension_numbers<[1], [0], [0], [1], [0, 0, 1, 1], [], []>} : vector<2x32xf32>, vector<32x128xf32>, vector<2x128xf32> -> vector<2x128xf32>
    %452 = arith.addf %450, %451 : vector<2x128xf32>
    %453 = arith.negf %452 : vector<2x128xf32>
    %454 = math.exp %453 : vector<2x128xf32>
    %cst_81 = arith.constant 1.000000e+00 : f32
    %455 = vector.broadcast %cst_81 : f32 to vector<2x128xf32>
    %456 = arith.addf %455, %454 : vector<2x128xf32>
    %457 = arith.divf %455, %456 : vector<2x128xf32>
    %458 = math.tanh %452 : vector<2x128xf32>
    %459 = vector.extract_strided_slice %457 {offsets = [0, 0], sizes = [2, 32], strides = [1, 1]} : vector<2x128xf32> to vector<2x32xf32>
    %460 = vector.extract_strided_slice %457 {offsets = [0, 32], sizes = [2, 32], strides = [1, 1]} : vector<2x128xf32> to vector<2x32xf32>
    %461 = vector.extract_strided_slice %458 {offsets = [0, 64], sizes = [2, 32], strides = [1, 1]} : vector<2x128xf32> to vector<2x32xf32>
    %462 = vector.extract_strided_slice %457 {offsets = [0, 96], sizes = [2, 32], strides = [1, 1]} : vector<2x128xf32> to vector<2x32xf32>
    %463 = arith.mulf %460, %447 : vector<2x32xf32>
    %464 = arith.mulf %459, %461 : vector<2x32xf32>
    %465 = arith.addf %463, %464 : vector<2x32xf32>
    %466 = math.tanh %465 : vector<2x32xf32>
    %467 = arith.mulf %462, %466 : vector<2x32xf32>
    %468 = tpu.concatenate %341, %359, %377, %395, %413, %431, %449, %467 in 0 : vector<2x32xf32>, vector<2x32xf32>, vector<2x32xf32>, vector<2x32xf32>, vector<2x32xf32>, vector<2x32xf32>, vector<2x32xf32>, vector<2x32xf32> -> vector<16x32xf32>
    %c0_82 = arith.constant 0 : index
    %c0_83 = arith.constant 0 : index
    %469 = vector.load %arg5[%c0_82, %c0_83] : memref<32x32xf32, #tpu.memory_space<vmem>>, vector<32x32xf32>
    %cst_84 = arith.constant dense<0.000000e+00> : vector<16x32xf32>
    %470 = tpu.matmul %468, %469, %cst_84 {dimension_numbers = #tpu.dot_dimension_numbers<[1], [0], [0], [1], [0, 0, 1, 1], [], []>} : vector<16x32xf32>, vector<32x32xf32>, vector<16x32xf32> -> vector<16x32xf32>
    %c0_85 = arith.constant 0 : index
    %c0_86 = arith.constant 0 : index
    %471 = vector.load %arg6[%c0_85, %c0_86] : memref<1x32xf32, #tpu.memory_space<vmem>>, vector<1x32xf32>
    %472 = vector.broadcast %471 : vector<1x32xf32> to vector<16x32xf32>
    %473 = arith.addf %470, %472 : vector<16x32xf32>
    %c0_87 = arith.constant 0 : index
    %c0_88 = arith.constant 0 : index
    %474 = vector.load %arg7[%c0_87, %c0_88] : memref<16x32xf32, #tpu.memory_space<vmem>>, vector<16x32xf32>
    tpu.vector_store %arg7[%c0_87, %c0_88], %473 {strides = array<i32>} : memref<16x32xf32, #tpu.memory_space<vmem>>, vector<16x32xf32>,
    return
  }
  func.func @transform_0(%arg0: i32) -> (i32, i32) {
    %c0_i32 = arith.constant 0 : i32
    %c0_i32_0 = arith.constant 0 : i32
    %c0_i32_1 = arith.constant 0 : i32
    return %c0_i32, %c0_i32_0 : i32, i32
  }
  func.func @transform_1(%arg0: i32) -> (i32, i32, i32) {
    %c0_i32 = arith.constant 0 : i32
    %c0_i32_0 = arith.constant 0 : i32
    %c0_i32_1 = arith.constant 0 : i32
    %c0_i32_2 = arith.constant 0 : i32
    return %c0_i32, %c0_i32_0, %c0_i32_1 : i32, i32, i32
  }
  func.func @transform_2(%arg0: i32) -> (i32, i32, i32) {
    %c0_i32 = arith.constant 0 : i32
    %c0_i32_0 = arith.constant 0 : i32
    %c0_i32_1 = arith.constant 0 : i32
    %c0_i32_2 = arith.constant 0 : i32
    return %c0_i32, %c0_i32_0, %c0_i32_1 : i32, i32, i32
  }
  func.func @transform_3(%arg0: i32) -> (i32, i32, i32) {
    %c0_i32 = arith.constant 0 : i32
    %c0_i32_0 = arith.constant 0 : i32
    %c0_i32_1 = arith.constant 0 : i32
    %c0_i32_2 = arith.constant 0 : i32
    return %c0_i32, %c0_i32_0, %c0_i32_1 : i32, i32, i32
  }
  func.func @transform_4(%arg0: i32) -> (i32, i32) {
    %c0_i32 = arith.constant 0 : i32
    %c0_i32_0 = arith.constant 0 : i32
    %c0_i32_1 = arith.constant 0 : i32
    return %c0_i32, %c0_i32_0 : i32, i32
  }
  func.func @transform_5(%arg0: i32) -> (i32, i32) {
    %c0_i32 = arith.constant 0 : i32
    %c0_i32_0 = arith.constant 0 : i32
    %c0_i32_1 = arith.constant 0 : i32
    return %c0_i32, %c0_i32_0 : i32, i32
  }
  func.func @transform_6(%arg0: i32) -> (i32, i32) {
    %c0_i32 = arith.constant 0 : i32
    %c0_i32_0 = arith.constant 0 : i32
    %c0_i32_1 = arith.constant 0 : i32
    return %c0_i32, %c0_i32_0 : i32, i32
  }
}

</mosaic_0001>

<llo_original>
// kernel: tpu_custom_call.1
$region0: #{tpu_custom_call.1}
  #allocation0 [shape = 'u32[]', space=smem, size = 0x4, offset = 0x4, fixed_abs, tag = 'smem constant byte address 0x4 - core index']
  #allocation1 [shape = 'u32[72,128]{1,0:T(1,128)}', space=vmem, size = 0x9000, scoped, tag = 'internal scratch']
  %s0 = inlined_call_operand.hbm [shape: f32[16,32], index: 0, kind: input, shape index: {}]
  %s1 = inlined_call_operand.hbm [shape: f32[3,32,128], index: 1, kind: input, shape index: {}]
  %s2 = inlined_call_operand.hbm [shape: f32[3,32,128], index: 2, kind: input, shape index: {}]
  %s3 = inlined_call_operand.hbm [shape: f32[3,1,128], index: 3, kind: input, shape index: {}]
  %s4 = inlined_call_operand.hbm [shape: f32[32,32], index: 4, kind: input, shape index: {}]
  %s5 = inlined_call_operand.vmem [shape: f32[1,32], index: 5, kind: input, shape index: {}]
  %s6 = inlined_call_operand.hbm [shape: f32[16,32], index: 6, kind: output, shape index: {}]
  %s7 = sld [smem:[#allocation0]]
  $region54: #{tpu_custom_call.1} parent=0
    _
  %s9 = ssub.s32 1, %s7
  %s10 = scalar_select 0, %s9, %s7
  $region1: #{tpu_custom_call.1} parent=0
    #allocation2 [shape = 'u8[8192]{0}', space=vmem, size = 0x2000, scoped, tag = 'input window, operand 0, single buffered']
    #allocation3 [shape = 's32[1]{0}', space=sflag, size = 0x4, scoped, tag = 'scoped memory for tpu_custom_call.1']
    #allocation4 [shape = 's32[1]{0}', space=sflag, size = 0x4, scoped, tag = 'scoped memory for tpu_custom_call.1']
    #allocation5 [shape = 'u8[49152]{0}', space=vmem, size = 0xc000, scoped, tag = 'input window, operand 1, single buffered']
    #allocation6 [shape = 's32[1]{0}', space=sflag, size = 0x4, scoped, tag = 'scoped memory for tpu_custom_call.1']
    #allocation7 [shape = 'u8[49152]{0}', space=vmem, size = 0xc000, scoped, tag = 'input window, operand 2, single buffered']
    #allocation8 [shape = 'u8[1536]{0}', space=vmem, size = 0x800, scoped, tag = 'input window, operand 3, single buffered']
    #allocation9 [shape = 's32[1]{0}', space=sflag, size = 0x4, scoped, tag = 'scoped memory for tpu_custom_call.1']
    #allocation10 [shape = 'u8[16384]{0}', space=vmem, size = 0x4000, scoped, tag = 'input window, operand 4, single buffered']
    #allocation11 [shape = 'u8[8192]{0}', space=vmem, size = 0x2000, scoped, tag = 'output window, operand 0, single buffered']
    %11 = vsyncpa [#allocation3], 0
    %12 = vsyncpa [#allocation6], 0
    %13 = vsyncpa [#allocation9], 0
    %14 = vsyncpa [#allocation4], 0
    // Predicated region
    $region2: #{tpu_custom_call.1} parent=1 // pred_check
      _
    $region3: #{tpu_custom_call.1} parent=1 // pred_check_branch
      %16 = sbr.rel (0) target = $region5
    $region4: #{tpu_custom_call.1} parent=1 // pred_region
      %18 = vsyncadd [#allocation3], 0
      %s19 = sshll.u32 %s0, 4
      %s20 = int_to_ptr.hbm [resolvable:$true] %s19
      %s21 = sshll.u32 [#allocation2], 4
      %s22 = int_to_ptr.vmem [resolvable:$true] %s21
      %27 = dma.hbm_to_vmem [thread:$0]  %s20, 256, %s22, [#allocation3], 128, 128, 8
    $region5: #{tpu_custom_call.1} parent=1 // pred_fallthru
      _
    // Predicated region
    $region6: #{tpu_custom_call.1} parent=1 // pred_check
      _
    $region7: #{tpu_custom_call.1} parent=1 // pred_check_branch
      %29 = sbr.rel (0) target = $region9
    $region8: #{tpu_custom_call.1} parent=1 // pred_region
      %31 = vsyncadd [#allocation6], 0
      %s32 = sshll.u32 %s1, 4
      %s33 = int_to_ptr.hbm [resolvable:$true] %s32
      %s34 = sshll.u32 [#allocation5], 4
      %s35 = int_to_ptr.vmem [resolvable:$true] %s34
      %40 = dma.hbm_to_vmem [thread:$0]  %s33, 1536, %s35, [#allocation6], 128, 128, 8
    $region9: #{tpu_custom_call.1} parent=1 // pred_fallthru
      _
    // Predicated region
    $region10: #{tpu_custom_call.1} parent=1 // pred_check
      _
    $region11: #{tpu_custom_call.1} parent=1 // pred_check_branch
      %42 = sbr.rel (0) target = $region13
    $region12: #{tpu_custom_call.1} parent=1 // pred_region
      %44 = vsyncadd [#allocation6], 0
      %s45 = sshll.u32 %s2, 4
      %s46 = int_to_ptr.hbm [resolvable:$true] %s45
      %s47 = sshll.u32 [#allocation7], 4
      %s48 = int_to_ptr.vmem [resolvable:$true] %s47
      %53 = dma.hbm_to_vmem [thread:$0]  %s46, 1536, %s48, [#allocation6], 128, 128, 8
    $region13: #{tpu_custom_call.1} parent=1 // pred_fallthru
      _
    // Predicated region
    $region14: #{tpu_custom_call.1} parent=1 // pred_check
      _
    $region15: #{tpu_custom_call.1} parent=1 // pred_check_branch
      %55 = sbr.rel (0) target = $region17
    $region16: #{tpu_custom_call.1} parent=1 // pred_region
      %57 = vsyncadd [#allocation9], 0
      %s58 = sshll.u32 %s3, 4
      %s59 = int_to_ptr.hbm [resolvable:$true] %s58
      %s60 = sshll.u32 [#allocation8], 4
      %s61 = int_to_ptr.vmem [resolvable:$true] %s60
      %66 = dma.hbm_to_vmem [thread:$0]  %s59, 48, %s61, [#allocation9], 16, 16, 1
    $region17: #{tpu_custom_call.1} parent=1 // pred_fallthru
      _
    // Predicated region
    $region18: #{tpu_custom_call.1} parent=1 // pred_check
      _
    $region19: #{tpu_custom_call.1} parent=1 // pred_check_branch
      %68 = sbr.rel (0) target = $region21
    $region20: #{tpu_custom_call.1} parent=1 // pred_region
      %70 = vsyncadd [#allocation9], 0
      %s71 = sshll.u32 %s4, 4
      %s72 = int_to_ptr.hbm [resolvable:$true] %s71
      %s73 = sshll.u32 [#allocation10], 4
      %s74 = int_to_ptr.vmem [resolvable:$true] %s73
      %79 = dma.hbm_to_vmem [thread:$0]  %s72, 512, %s74, [#allocation9], 128, 128, 8
    $region21: #{tpu_custom_call.1} parent=1 // pred_fallthru
      _
    // Predicated region
    $region22: #{tpu_custom_call.1} parent=1 // pred_check
      _
    $region23: #{tpu_custom_call.1} parent=1 // pred_check_branch
      %81 = sbr.rel (0) target = $region25
    $region24: #{tpu_custom_call.1} parent=1 // pred_region
      _
    $region25: #{tpu_custom_call.1} parent=1 // pred_fallthru
      _
    // Predicated region
    $region26: #{tpu_custom_call.1} parent=1 // pred_check
      _
    $region27: #{tpu_custom_call.1} parent=1 // pred_check_branch
      %83 = sbr.rel (0) target = $region29
    $region28: #{tpu_custom_call.1} parent=1 // pred_region
      %85 = dma.done [#allocation3], 256
    $region29: #{tpu_custom_call.1} parent=1 // pred_fallthru
      _
    // Predicated region
    $region30: #{tpu_custom_call.1} parent=1 // pred_check
      _
    $region31: #{tpu_custom_call.1} parent=1 // pred_check_branch
      %87 = sbr.rel (0) target = $region33
    $region32: #{tpu_custom_call.1} parent=1 // pred_region
      %89 = dma.done [#allocation6], 1536
    $region33: #{tpu_custom_call.1} parent=1 // pred_fallthru
      _
    // Predicated region
    $region34: #{tpu_custom_call.1} parent=1 // pred_check
      _
    $region35: #{tpu_custom_call.1} parent=1 // pred_check_branch
      %91 = sbr.rel (0) target = $region37
    $region36: #{tpu_custom_call.1} parent=1 // pred_region
      %93 = dma.done [#allocation6], 1536
    $region37: #{tpu_custom_call.1} parent=1 // pred_fallthru
      _
    // Predicated region
    $region38: #{tpu_custom_call.1} parent=1 // pred_check
      _
    $region39: #{tpu_custom_call.1} parent=1 // pred_check_branch
      %95 = sbr.rel (0) target = $region41
    $region40: #{tpu_custom_call.1} parent=1 // pred_region
      %97 = dma.done [#allocation9], 48
    $region41: #{tpu_custom_call.1} parent=1 // pred_fallthru
      _
    // Predicated region
    $region42: #{tpu_custom_call.1} parent=1 // pred_check
      _
    $region43: #{tpu_custom_call.1} parent=1 // pred_check_branch
      %99 = sbr.rel (0) target = $region45
    $region44: #{tpu_custom_call.1} parent=1 // pred_region
      %101 = dma.done [#allocation9], 512
    $region45: #{tpu_custom_call.1} parent=1 // pred_fallthru
      _
    %v102 = vld [vmem:[#allocation2] sm:$0xff]
    %v103 = vld [vmem:[#allocation2 + $0x8] sm:$0xff]
    %v104 = vld [vmem:[#allocation5] sm:$0xff]
    %v105 = vld [vmem:[#allocation5 + $0x8] sm:$0xff]
    %v106 = vld [vmem:[#allocation5 + $0x10] sm:$0xff]
    %v107 = vld [vmem:[#allocation5 + $0x18] sm:$0xff]
    %v108 = vld [vmem:[#allocation7] sm:$0xff]
    %v109 = vld [vmem:[#allocation7 + $0x8] sm:$0xff]
    %v110 = vld [vmem:[#allocation7 + $0x10] sm:$0xff]
    %v111 = vld [vmem:[#allocation7 + $0x18] sm:$0xff]
    %v112 = vld [vmem:[#allocation8] sm:$0x1]
    %v114 = vperm.slane %v112, 0
    %vm116 = vcmask 261120
    %v118 = vsel %vm116, %v102, 0
    %v121 = vsel %vm116, %v103, 0
    %123 = vmatpush.msra.mxu0 0.0
    %124 = vmatpush.msra.mxu0 0.0
    %125 = vmatpush.msra.mxu0 0.0
    %126 = vmatpush.msra.mxu0 0.0
    %127 = vmatpush.msra.mxu0 0.0
    %128 = vmatpush.msra.mxu0 0.0
    %129 = vmatpush.msra.mxu0 0.0
    %130 = vmatpush.msra.mxu0 0.0
    %131 = vmatpush.msra.mxu0 0.0
    %132 = vmatpush.msra.mxu0 0.0
    %133 = vmatpush.msra.mxu0 0.0
    %134 = vmatpush.msra.mxu0 0.0
    %135 = vmatpush.msra.mxu0 %v107
    %136 = vmatpush.msra.mxu0 %v106
    %137 = vmatpush.msra.mxu0 %v105
    %138 = vmatpush.msra.mxu0 %v104
    %139 = vmatmul.f32.gmra.mxu0 %v118
    %v140 = vpop.f32.mrf.mxu0
    %v141 = vadd.f32 %v114, %v140
    %142 = vmatmul.f32.gmra.mxu0 %v121
    %v143 = vpop.f32.mrf.mxu0
    %v144 = vadd.f32 %v114, %v143
    %145 = vdwg.mxu0
    %v147 = vsel %vm116, 0.0, 0
    %149 = vmatpush.msra.mxu0 0.0
    %150 = vmatpush.msra.mxu0 0.0
    %151 = vmatpush.msra.mxu0 0.0
    %152 = vmatpush.msra.mxu0 0.0
    %153 = vmatpush.msra.mxu0 0.0
    %154 = vmatpush.msra.mxu0 0.0
    %155 = vmatpush.msra.mxu0 0.0
    %156 = vmatpush.msra.mxu0 0.0
    %157 = vmatpush.msra.mxu0 0.0
    %158 = vmatpush.msra.mxu0 0.0
    %159 = vmatpush.msra.mxu0 0.0
    %160 = vmatpush.msra.mxu0 0.0
    %161 = vmatpush.msra.mxu0 %v111
    %162 = vmatpush.msra.mxu0 %v110
    %163 = vmatpush.msra.mxu0 %v109
    %164 = vmatpush.msra.mxu0 %v108
    %165 = vmatmul.f32.gmra.mxu0 %v147
    %v166 = vpop.f32.mrf.mxu0
    %v167 = vadd.f32 0.0, %v166
    %168 = vdwg.mxu0
    %v169 = vadd.f32 %v141, %v167
    %v170 = vxor.u32 %v169, 2147483648
    %v171 = vmul.f32 %v170, 1.442695
    %v172 = vpow.pop %v171
    %v173 = vadd.f32 %v172, 1.0
    %v174 = vrcp.pop %v173
    %v175 = vmul.f32 %v173, %v174
    %v176 = vsub.f32 1.0, %v175
    %v177 = vmul.f32 %v174, %v176
    %v178 = vadd.f32 %v174, %v177
    %vm179 = vweird.f32 %v173
    %vm180 = vweird.f32 %v174
    %vm181 = vmor %vm179, %vm180
    %v182 = vsel %vm181, %v174, %v178
    %v183 = vand.u32 2147483647, %v173
    %vm184 = vcmp.eq.f32.partialorder %v183, 8.507059e+37
    %v185 = vand.u32 %v173, 2147483648
    %v186 = vor.u32 1.1754944e-38, %v185
    %v187 = vsel %vm184, %v186, %v182
    %v188 = vmul.f32 1.0, %v187
    %v189 = vtanh.pop %v169
    %v190 = vmul.f32 %v188, 0.0
    %192 = vrot.lane.b32.xlu0 %v189, 64
    %v193 = vpop.permute.xlu0 %192
    %v195 = vmul.f32 %v188, %v193
    %197 = vrot.lane.b32.xlu0 %v195, 32
    %v198 = vpop.permute.xlu0 %197
    %v200 = vadd.f32 %v190, %v198
    %v201 = vtanh.pop %v200
    %203 = vrot.lane.b32.xlu0 %v201, 64
    %v204 = vpop.permute.xlu0 %203
    %v206 = vmul.f32 %v188, %v204
    %208 = vrot.lane.b32.xlu0 %v206, 32
    %v209 = vpop.permute.xlu0 %208
    %v210 = vsel %vm116, %v209, 0
    %212 = vmatpush.msra.mxu0 0.0
    %213 = vmatpush.msra.mxu0 0.0
    %214 = vmatpush.msra.mxu0 0.0
    %215 = vmatpush.msra.mxu0 0.0
    %216 = vmatpush.msra.mxu0 0.0
    %217 = vmatpush.msra.mxu0 0.0
    %218 = vmatpush.msra.mxu0 0.0
    %219 = vmatpush.msra.mxu0 0.0
    %220 = vmatpush.msra.mxu0 0.0
    %221 = vmatpush.msra.mxu0 0.0
    %222 = vmatpush.msra.mxu0 0.0
    %223 = vmatpush.msra.mxu0 0.0
    %224 = vmatpush.msra.mxu0 %v111
    %225 = vmatpush.msra.mxu0 %v110
    %226 = vmatpush.msra.mxu0 %v109
    %227 = vmatpush.msra.mxu0 %v108
    %228 = vmatmul.f32.gmra.mxu0 %v210
    %v229 = vpop.f32.mrf.mxu0
    %v230 = vadd.f32 0.0, %v229
    %231 = vdwg.mxu0
    %v233 = vrot.slane %v230, 6
    %v235 = vadd.f32 %v141, %v233
    %v236 = vxor.u32 %v235, 2147483648
    %v237 = vmul.f32 %v236, 1.442695
    %v238 = vpow.pop %v237
    %v239 = vadd.f32 %v238, 1.0
    %v240 = vrcp.pop %v239
    %v241 = vmul.f32 %v239, %v240
    %v242 = vsub.f32 1.0, %v241
    %v243 = vmul.f32 %v240, %v242
    %v244 = vadd.f32 %v240, %v243
    %vm245 = vweird.f32 %v239
    %vm246 = vweird.f32 %v240
    %vm247 = vmor %vm245, %vm246
    %v248 = vsel %vm247, %v240, %v244
    %v249 = vand.u32 2147483647, %v239
    %vm250 = vcmp.eq.f32.partialorder %v249, 8.507059e+37
    %v251 = vand.u32 %v239, 2147483648
    %v252 = vor.u32 1.1754944e-38, %v251
    %v253 = vsel %vm250, %v252, %v248
    %v254 = vmul.f32 1.0, %v253
    %v255 = vtanh.pop %v235
    %v257 = vrot.slane %v200, 6
    %v259 = vmul.f32 %v254, %v257
    %261 = vrot.lane.b32.xlu0 %v255, 64
    %v262 = vpop.permute.xlu0 %261
    %v264 = vmul.f32 %v254, %v262
    %266 = vrot.lane.b32.xlu0 %v264, 32
    %v267 = vpop.permute.xlu0 %266
    %v269 = vadd.f32 %v259, %v267
    %v270 = vtanh.pop %v269
    %272 = vrot.lane.b32.xlu0 %v270, 64
    %v273 = vpop.permute.xlu0 %272
    %v275 = vmul.f32 %v254, %v273
    %v277 = vrot.slane %v275, 2
    %278 = vrot.lane.b32.xlu0 %v277, 32
    %v279 = vpop.permute.xlu0 %278
    %v280 = vsel %vm116, %v279, 0
    %282 = vmatpush.msra.mxu0 0.0
    %283 = vmatpush.msra.mxu0 0.0
    %284 = vmatpush.msra.mxu0 0.0
    %285 = vmatpush.msra.mxu0 0.0
    %286 = vmatpush.msra.mxu0 0.0
    %287 = vmatpush.msra.mxu0 0.0
    %288 = vmatpush.msra.mxu0 0.0
    %289 = vmatpush.msra.mxu0 0.0
    %290 = vmatpush.msra.mxu0 0.0
    %291 = vmatpush.msra.mxu0 0.0
    %292 = vmatpush.msra.mxu0 0.0
    %293 = vmatpush.msra.mxu0 0.0
    %294 = vmatpush.msra.mxu0 %v111
    %295 = vmatpush.msra.mxu0 %v110
    %296 = vmatpush.msra.mxu0 %v109
    %297 = vmatpush.msra.mxu0 %v108
    %298 = vmatmul.f32.gmra.mxu0 %v280
    %v299 = vpop.f32.mrf.mxu0
    %v300 = vadd.f32 0.0, %v299
    %301 = vdwg.mxu0
    %v303 = vrot.slane %v300, 4
    %v305 = vadd.f32 %v141, %v303
    %v306 = vxor.u32 %v305, 2147483648
    %v307 = vmul.f32 %v306, 1.442695
    %v308 = vpow.pop %v307
    %v309 = vadd.f32 %v308, 1.0
    %v310 = vrcp.pop %v309
    %v311 = vmul.f32 %v309, %v310
    %v312 = vsub.f32 1.0, %v311
    %v313 = vmul.f32 %v310, %v312
    %v314 = vadd.f32 %v310, %v313
    %vm315 = vweird.f32 %v309
    %vm316 = vweird.f32 %v310
    %vm317 = vmor %vm315, %vm316
    %v318 = vsel %vm317, %v310, %v314
    %v319 = vand.u32 2147483647, %v309
    %vm320 = vcmp.eq.f32.partialorder %v319, 8.507059e+37
    %v321 = vand.u32 %v309, 2147483648
    %v322 = vor.u32 1.1754944e-38, %v321
    %v323 = vsel %vm320, %v322, %v318
    %v324 = vmul.f32 1.0, %v323
    %v325 = vtanh.pop %v305
    %v327 = vrot.slane %v269, 6
    %v329 = vmul.f32 %v324, %v327
    %331 = vrot.lane.b32.xlu0 %v325, 64
    %v332 = vpop.permute.xlu0 %331
    %v334 = vmul.f32 %v324, %v332
    %336 = vrot.lane.b32.xlu0 %v334, 32
    %v337 = vpop.permute.xlu0 %336
    %v339 = vadd.f32 %v329, %v337
    %v340 = vtanh.pop %v339
    %342 = vrot.lane.b32.xlu0 %v340, 64
    %v343 = vpop.permute.xlu0 %342
    %v345 = vmul.f32 %v324, %v343
    %v347 = vrot.slane %v345, 4
    %348 = vrot.lane.b32.xlu0 %v347, 32
    %v349 = vpop.permute.xlu0 %348
    %v350 = vsel %vm116, %v349, 0
    %352 = vmatpush.msra.mxu0 0.0
    %353 = vmatpush.msra.mxu0 0.0
    %354 = vmatpush.msra.mxu0 0.0
    %355 = vmatpush.msra.mxu0 0.0
    %356 = vmatpush.msra.mxu0 0.0
    %357 = vmatpush.msra.mxu0 0.0
    %358 = vmatpush.msra.mxu0 0.0
    %359 = vmatpush.msra.mxu0 0.0
    %360 = vmatpush.msra.mxu0 0.0
    %361 = vmatpush.msra.mxu0 0.0
    %362 = vmatpush.msra.mxu0 0.0
    %363 = vmatpush.msra.mxu0 0.0
    %364 = vmatpush.msra.mxu0 %v111
    %365 = vmatpush.msra.mxu0 %v110
    %366 = vmatpush.msra.mxu0 %v109
    %367 = vmatpush.msra.mxu0 %v108
    %368 = vmatmul.f32.gmra.mxu0 %v350
    %v369 = vpop.f32.mrf.mxu0
    %v370 = vadd.f32 0.0, %v369
    %371 = vdwg.mxu0
    %v373 = vrot.slane %v370, 2
    %v375 = vadd.f32 %v141, %v373
    %v376 = vxor.u32 %v375, 2147483648
    %v377 = vmul.f32 %v376, 1.442695
    %v378 = vpow.pop %v377
    %v379 = vadd.f32 %v378, 1.0
    %v380 = vrcp.pop %v379
    %v381 = vmul.f32 %v379, %v380
    %v382 = vsub.f32 1.0, %v381
    %v383 = vmul.f32 %v380, %v382
    %v384 = vadd.f32 %v380, %v383
    %vm385 = vweird.f32 %v379
    %vm386 = vweird.f32 %v380
    %vm387 = vmor %vm385, %vm386
    %v388 = vsel %vm387, %v380, %v384
    %v389 = vand.u32 2147483647, %v379
    %vm390 = vcmp.eq.f32.partialorder %v389, 8.507059e+37
    %v391 = vand.u32 %v379, 2147483648
    %v392 = vor.u32 1.1754944e-38, %v391
    %v393 = vsel %vm390, %v392, %v388
    %v394 = vmul.f32 1.0, %v393
    %v395 = vtanh.pop %v375
    %v397 = vrot.slane %v339, 6
    %v399 = vmul.f32 %v394, %v397
    %401 = vrot.lane.b32.xlu0 %v395, 64
    %v402 = vpop.permute.xlu0 %401
    %v404 = vmul.f32 %v394, %v402
    %406 = vrot.lane.b32.xlu0 %v404, 32
    %v407 = vpop.permute.xlu0 %406
    %v409 = vadd.f32 %v399, %v407
    %v410 = vtanh.pop %v409
    %412 = vrot.lane.b32.xlu0 %v410, 64
    %v413 = vpop.permute.xlu0 %412
    %v415 = vmul.f32 %v394, %v413
    %v417 = vrot.slane %v415, 6
    %418 = vrot.lane.b32.xlu0 %v417, 32
    %v419 = vpop.permute.xlu0 %418
    %v420 = vsel %vm116, %v419, 0
    %422 = vmatpush.msra.mxu0 0.0
    %423 = vmatpush.msra.mxu0 0.0
    %424 = vmatpush.msra.mxu0 0.0
    %425 = vmatpush.msra.mxu0 0.0
    %426 = vmatpush.msra.mxu0 0.0
    %427 = vmatpush.msra.mxu0 0.0
    %428 = vmatpush.msra.mxu0 0.0
    %429 = vmatpush.msra.mxu0 0.0
    %430 = vmatpush.msra.mxu0 0.0
    %431 = vmatpush.msra.mxu0 0.0
    %432 = vmatpush.msra.mxu0 0.0
    %433 = vmatpush.msra.mxu0 0.0
    %434 = vmatpush.msra.mxu0 %v111
    %435 = vmatpush.msra.mxu0 %v110
    %436 = vmatpush.msra.mxu0 %v109
    %437 = vmatpush.msra.mxu0 %v108
    %438 = vmatmul.f32.gmra.mxu0 %v420
    %v439 = vpop.f32.mrf.mxu0
    %v440 = vadd.f32 0.0, %v439
    %441 = vdwg.mxu0
    %v442 = vadd.f32 %v144, %v440
    %v443 = vxor.u32 %v442, 2147483648
    %v444 = vmul.f32 %v443, 1.442695
    %v445 = vpow.pop %v444
    %v446 = vadd.f32 %v445, 1.0
    %v447 = vrcp.pop %v446
    %v448 = vmul.f32 %v446, %v447
    %v449 = vsub.f32 1.0, %v448
    %v450 = vmul.f32 %v447, %v449
    %v451 = vadd.f32 %v447, %v450
    %vm452 = vweird.f32 %v446
    %vm453 = vweird.f32 %v447
    %vm454 = vmor %vm452, %vm453
    %v455 = vsel %vm454, %v447, %v451
    %v456 = vand.u32 2147483647, %v446
    %vm457 = vcmp.eq.f32.partialorder %v456, 8.507059e+37
    %v458 = vand.u32 %v446, 2147483648
    %v459 = vor.u32 1.1754944e-38, %v458
    %v460 = vsel %vm457, %v459, %v455
    %v461 = vmul.f32 1.0, %v460
    %v462 = vtanh.pop %v442
    %v464 = vrot.slane %v409, 6
    %v466 = vmul.f32 %v461, %v464
    %468 = vrot.lane.b32.xlu0 %v462, 64
    %v469 = vpop.permute.xlu0 %468
    %v471 = vmul.f32 %v461, %v469
    %473 = vrot.lane.b32.xlu0 %v471, 32
    %v474 = vpop.permute.xlu0 %473
    %v476 = vadd.f32 %v466, %v474
    %v477 = vtanh.pop %v476
    %479 = vrot.lane.b32.xlu0 %v477, 64
    %v480 = vpop.permute.xlu0 %479
    %v482 = vmul.f32 %v461, %v480
    %484 = vrot.lane.b32.xlu0 %v482, 32
    %v485 = vpop.permute.xlu0 %484
    %v486 = vsel %vm116, %v485, 0
    %488 = vmatpush.msra.mxu0 0.0
    %489 = vmatpush.msra.mxu0 0.0
    %490 = vmatpush.msra.mxu0 0.0
    %491 = vmatpush.msra.mxu0 0.0
    %492 = vmatpush.msra.mxu0 0.0
    %493 = vmatpush.msra.mxu0 0.0
    %494 = vmatpush.msra.mxu0 0.0
    %495 = vmatpush.msra.mxu0 0.0
    %496 = vmatpush.msra.mxu0 0.0
    %497 = vmatpush.msra.mxu0 0.0
    %498 = vmatpush.msra.mxu0 0.0
    %499 = vmatpush.msra.mxu0 0.0
    %500 = vmatpush.msra.mxu0 %v111
    %501 = vmatpush.msra.mxu0 %v110
    %502 = vmatpush.msra.mxu0 %v109
    %503 = vmatpush.msra.mxu0 %v108
    %504 = vmatmul.f32.gmra.mxu0 %v486
    %v505 = vpop.f32.mrf.mxu0
    %v506 = vadd.f32 0.0, %v505
    %507 = vdwg.mxu0
    %v509 = vrot.slane %v506, 6
    %v511 = vadd.f32 %v144, %v509
    %v512 = vxor.u32 %v511, 2147483648
    %v513 = vmul.f32 %v512, 1.442695
    %v514 = vpow.pop %v513
    %v515 = vadd.f32 %v514, 1.0
    %v516 = vrcp.pop %v515
    %v517 = vmul.f32 %v515, %v516
    %v518 = vsub.f32 1.0, %v517
    %v519 = vmul.f32 %v516, %v518
    %v520 = vadd.f32 %v516, %v519
    %vm521 = vweird.f32 %v515
    %vm522 = vweird.f32 %v516
    %vm523 = vmor %vm521, %vm522
    %v524 = vsel %vm523, %v516, %v520
    %v525 = vand.u32 2147483647, %v515
    %vm526 = vcmp.eq.f32.partialorder %v525, 8.507059e+37
    %v527 = vand.u32 %v515, 2147483648
    %v528 = vor.u32 1.1754944e-38, %v527
    %v529 = vsel %vm526, %v528, %v524
    %v530 = vmul.f32 1.0, %v529
    %v531 = vtanh.pop %v511
    %v533 = vrot.slane %v476, 6
    %v535 = vmul.f32 %v530, %v533
    %537 = vrot.lane.b32.xlu0 %v531, 64
    %v538 = vpop.permute.xlu0 %537
    %v540 = vmul.f32 %v530, %v538
    %542 = vrot.lane.b32.xlu0 %v540, 32
    %v543 = vpop.permute.xlu0 %542
    %v545 = vadd.f32 %v535, %v543
    %v546 = vtanh.pop %v545
    %548 = vrot.lane.b32.xlu0 %v546, 64
    %v549 = vpop.permute.xlu0 %548
    %v551 = vmul.f32 %v530, %v549
    %v553 = vrot.slane %v551, 2
    %554 = vrot.lane.b32.xlu0 %v553, 32
    %v555 = vpop.permute.xlu0 %554
    %v556 = vsel %vm116, %v555, 0
    %558 = vmatpush.msra.mxu0 0.0
    %559 = vmatpush.msra.mxu0 0.0
    %560 = vmatpush.msra.mxu0 0.0
    %561 = vmatpush.msra.mxu0 0.0
    %562 = vmatpush.msra.mxu0 0.0
    %563 = vmatpush.msra.mxu0 0.0
    %564 = vmatpush.msra.mxu0 0.0
    %565 = vmatpush.msra.mxu0 0.0
    %566 = vmatpush.msra.mxu0 0.0
    %567 = vmatpush.msra.mxu0 0.0
    %568 = vmatpush.msra.mxu0 0.0
    %569 = vmatpush.msra.mxu0 0.0
    %570 = vmatpush.msra.mxu0 %v111
    %571 = vmatpush.msra.mxu0 %v110
    %572 = vmatpush.msra.mxu0 %v109
    %573 = vmatpush.msra.mxu0 %v108
    %574 = vmatmul.f32.gmra.mxu0 %v556
    %v575 = vpop.f32.mrf.mxu0
    %v576 = vadd.f32 0.0, %v575
    %577 = vdwg.mxu0
    %v579 = vrot.slane %v576, 4
    %v581 = vadd.f32 %v144, %v579
    %v582 = vxor.u32 %v581, 2147483648
    %v583 = vmul.f32 %v582, 1.442695
    %v584 = vpow.pop %v583
    %v585 = vadd.f32 %v584, 1.0
    %v586 = vrcp.pop %v585
    %v587 = vmul.f32 %v585, %v586
    %v588 = vsub.f32 1.0, %v587
    %v589 = vmul.f32 %v586, %v588
    %v590 = vadd.f32 %v586, %v589
    %vm591 = vweird.f32 %v585
    %vm592 = vweird.f32 %v586
    %vm593 = vmor %vm591, %vm592
    %v594 = vsel %vm593, %v586, %v590
    %v595 = vand.u32 2147483647, %v585
    %vm596 = vcmp.eq.f32.partialorder %v595, 8.507059e+37
    %v597 = vand.u32 %v585, 2147483648
    %v598 = vor.u32 1.1754944e-38, %v597
    %v599 = vsel %vm596, %v598, %v594
    %v600 = vmul.f32 1.0, %v599
    %v601 = vtanh.pop %v581
    %v603 = vrot.slane %v545, 6
    %v605 = vmul.f32 %v600, %v603
    %607 = vrot.lane.b32.xlu0 %v601, 64
    %v608 = vpop.permute.xlu0 %607
    %v610 = vmul.f32 %v600, %v608
    %612 = vrot.lane.b32.xlu0 %v610, 32
    %v613 = vpop.permute.xlu0 %612
    %v615 = vadd.f32 %v605, %v613
    %v616 = vtanh.pop %v615
    %618 = vrot.lane.b32.xlu0 %v616, 64
    %v619 = vpop.permute.xlu0 %618
    %v621 = vmul.f32 %v600, %v619
    %v623 = vrot.slane %v621, 4
    %624 = vrot.lane.b32.xlu0 %v623, 32
    %v625 = vpop.permute.xlu0 %624
    %v626 = vsel %vm116, %v625, 0
    %628 = vmatpush.msra.mxu0 0.0
    %629 = vmatpush.msra.mxu0 0.0
    %630 = vmatpush.msra.mxu0 0.0
    %631 = vmatpush.msra.mxu0 0.0
    %632 = vmatpush.msra.mxu0 0.0
    %633 = vmatpush.msra.mxu0 0.0
    %634 = vmatpush.msra.mxu0 0.0
    %635 = vmatpush.msra.mxu0 0.0
    %636 = vmatpush.msra.mxu0 0.0
    %637 = vmatpush.msra.mxu0 0.0
    %638 = vmatpush.msra.mxu0 0.0
    %639 = vmatpush.msra.mxu0 0.0
    %640 = vmatpush.msra.mxu0 %v111
    %641 = vmatpush.msra.mxu0 %v110
    %642 = vmatpush.msra.mxu0 %v109
    %643 = vmatpush.msra.mxu0 %v108
    %644 = vmatmul.f32.gmra.mxu0 %v626
    %v645 = vpop.f32.mrf.mxu0
    %v646 = vadd.f32 0.0, %v645
    %647 = vdwg.mxu0
    %v649 = vrot.slane %v646, 2
    %v651 = vadd.f32 %v144, %v649
    %v652 = vxor.u32 %v651, 2147483648
    %v653 = vmul.f32 %v652, 1.442695
    %v654 = vpow.pop %v653
    %v655 = vadd.f32 %v654, 1.0
    %v656 = vrcp.pop %v655
    %v657 = vmul.f32 %v655, %v656
    %v658 = vsub.f32 1.0, %v657
    %v659 = vmul.f32 %v656, %v658
    %v660 = vadd.f32 %v656, %v659
    %vm661 = vweird.f32 %v655
    %vm662 = vweird.f32 %v656
    %vm663 = vmor %vm661, %vm662
    %v664 = vsel %vm663, %v656, %v660
    %v665 = vand.u32 2147483647, %v655
    %vm666 = vcmp.eq.f32.partialorder %v665, 8.507059e+37
    %v667 = vand.u32 %v655, 2147483648
    %v668 = vor.u32 1.1754944e-38, %v667
    %v669 = vsel %vm666, %v668, %v664
    %v670 = vmul.f32 1.0, %v669
    %v671 = vtanh.pop %v651
    %v673 = vrot.slane %v615, 6
    %v675 = vmul.f32 %v670, %v673
    %677 = vrot.lane.b32.xlu0 %v671, 64
    %v678 = vpop.permute.xlu0 %677
    %v680 = vmul.f32 %v670, %v678
    %682 = vrot.lane.b32.xlu0 %v680, 32
    %v683 = vpop.permute.xlu0 %682
    %v685 = vadd.f32 %v675, %v683
    %v686 = vtanh.pop %v685
    %688 = vrot.lane.b32.xlu0 %v686, 64
    %v689 = vpop.permute.xlu0 %688
    %v691 = vmul.f32 %v670, %v689
    %vm692 = vcmask 1041408
    %v693 = vsel %vm692, %v206, %v275
    %vm694 = vcmask 1043456
    %v695 = vsel %vm694, %v693, %v345
    %vm696 = vcmask 1045504
    %v697 = vsel %vm696, %v695, %v415
    %v698 = vsel %vm692, %v482, %v551
    %v699 = vsel %vm694, %v698, %v621
    %v700 = vsel %vm696, %v699, %v691
    %s701 = scalar_lea.vmem [#allocation5], 32
    %v702 = vld [vmem:[%s701] sm:$0xff]
    %v703 = vld [vmem:[%s701 + $0x8] sm:$0xff]
    %v704 = vld [vmem:[%s701 + $0x10] sm:$0xff]
    %v705 = vld [vmem:[%s701 + $0x18] sm:$0xff]
    %s706 = scalar_lea.vmem [#allocation7], 32
    %v707 = vld [vmem:[%s706] sm:$0xff]
    %v708 = vld [vmem:[%s706 + $0x8] sm:$0xff]
    %v709 = vld [vmem:[%s706 + $0x10] sm:$0xff]
    %v710 = vld [vmem:[%s706 + $0x18] sm:$0xff]
    %s711 = scalar_lea.vmem [#allocation8], 1
    %v712 = vld [vmem:[%s711] sm:$0x1]
    %v714 = vperm.slane %v712, 0
    %718 = vrot.lane.b32.xlu0 %v697, 32
    %v719 = vpop.permute.xlu0 %718
    %720 = vrot.lane.b32.xlu0 %v700, 32
    %v721 = vpop.permute.xlu0 %720
    %v722 = vsel %vm116, %v719, 0
    %v724 = vsel %vm116, %v721, 0
    %726 = vmatpush.msra.mxu0 0.0
    %727 = vmatpush.msra.mxu0 0.0
    %728 = vmatpush.msra.mxu0 0.0
    %729 = vmatpush.msra.mxu0 0.0
    %730 = vmatpush.msra.mxu0 0.0
    %731 = vmatpush.msra.mxu0 0.0
    %732 = vmatpush.msra.mxu0 0.0
    %733 = vmatpush.msra.mxu0 0.0
    %734 = vmatpush.msra.mxu0 0.0
    %735 = vmatpush.msra.mxu0 0.0
    %736 = vmatpush.msra.mxu0 0.0
    %737 = vmatpush.msra.mxu0 0.0
    %738 = vmatpush.msra.mxu0 %v705
    %739 = vmatpush.msra.mxu0 %v704
    %740 = vmatpush.msra.mxu0 %v703
    %741 = vmatpush.msra.mxu0 %v702
    %742 = vmatmul.f32.gmra.mxu0 %v722
    %v743 = vpop.f32.mrf.mxu0
    %v744 = vadd.f32 %v714, %v743
    %745 = vmatmul.f32.gmra.mxu0 %v724
    %v746 = vpop.f32.mrf.mxu0
    %v747 = vadd.f32 %v714, %v746
    %748 = vdwg.mxu0
    %749 = vmatpush.msra.mxu0 0.0
    %750 = vmatpush.msra.mxu0 0.0
    %751 = vmatpush.msra.mxu0 0.0
    %752 = vmatpush.msra.mxu0 0.0
    %753 = vmatpush.msra.mxu0 0.0
    %754 = vmatpush.msra.mxu0 0.0
    %755 = vmatpush.msra.mxu0 0.0
    %756 = vmatpush.msra.mxu0 0.0
    %757 = vmatpush.msra.mxu0 0.0
    %758 = vmatpush.msra.mxu0 0.0
    %759 = vmatpush.msra.mxu0 0.0
    %760 = vmatpush.msra.mxu0 0.0
    %761 = vmatpush.msra.mxu0 %v710
    %762 = vmatpush.msra.mxu0 %v709
    %763 = vmatpush.msra.mxu0 %v708
    %764 = vmatpush.msra.mxu0 %v707
    %765 = vmatmul.f32.gmra.mxu0 %v147
    %v766 = vpop.f32.mrf.mxu0
    %v767 = vadd.f32 0.0, %v766
    %768 = vdwg.mxu0
    %v769 = vadd.f32 %v744, %v767
    %v770 = vxor.u32 %v769, 2147483648
    %v771 = vmul.f32 %v770, 1.442695
    %v772 = vpow.pop %v771
    %v773 = vadd.f32 %v772, 1.0
    %v774 = vrcp.pop %v773
    %v775 = vmul.f32 %v773, %v774
    %v776 = vsub.f32 1.0, %v775
    %v777 = vmul.f32 %v774, %v776
    %v778 = vadd.f32 %v774, %v777
    %vm779 = vweird.f32 %v773
    %vm780 = vweird.f32 %v774
    %vm781 = vmor %vm779, %vm780
    %v782 = vsel %vm781, %v774, %v778
    %v783 = vand.u32 2147483647, %v773
    %vm784 = vcmp.eq.f32.partialorder %v783, 8.507059e+37
    %v785 = vand.u32 %v773, 2147483648
    %v786 = vor.u32 1.1754944e-38, %v785
    %v787 = vsel %vm784, %v786, %v782
    %v788 = vmul.f32 1.0, %v787
    %v789 = vtanh.pop %v769
    %v790 = vmul.f32 %v788, 0.0
    %792 = vrot.lane.b32.xlu0 %v789, 64
    %v793 = vpop.permute.xlu0 %792
    %v795 = vmul.f32 %v788, %v793
    %797 = vrot.lane.b32.xlu0 %v795, 32
    %v798 = vpop.permute.xlu0 %797
    %v800 = vadd.f32 %v790, %v798
    %v801 = vtanh.pop %v800
    %803 = vrot.lane.b32.xlu0 %v801, 64
    %v804 = vpop.permute.xlu0 %803
    %v806 = vmul.f32 %v788, %v804
    %808 = vrot.lane.b32.xlu0 %v806, 32
    %v809 = vpop.permute.xlu0 %808
    %v810 = vsel %vm116, %v809, 0
    %812 = vmatpush.msra.mxu0 0.0
    %813 = vmatpush.msra.mxu0 0.0
    %814 = vmatpush.msra.mxu0 0.0
    %815 = vmatpush.msra.mxu0 0.0
    %816 = vmatpush.msra.mxu0 0.0
    %817 = vmatpush.msra.mxu0 0.0
    %818 = vmatpush.msra.mxu0 0.0
    %819 = vmatpush.msra.mxu0 0.0
    %820 = vmatpush.msra.mxu0 0.0
    %821 = vmatpush.msra.mxu0 0.0
    %822 = vmatpush.msra.mxu0 0.0
    %823 = vmatpush.msra.mxu0 0.0
    %824 = vmatpush.msra.mxu0 %v710
    %825 = vmatpush.msra.mxu0 %v709
    %826 = vmatpush.msra.mxu0 %v708
    %827 = vmatpush.msra.mxu0 %v707
    %828 = vmatmul.f32.gmra.mxu0 %v810
    %v829 = vpop.f32.mrf.mxu0
    %v830 = vadd.f32 0.0, %v829
    %831 = vdwg.mxu0
    %v833 = vrot.slane %v830, 6
    %v835 = vadd.f32 %v744, %v833
    %v836 = vxor.u32 %v835, 2147483648
    %v837 = vmul.f32 %v836, 1.442695
    %v838 = vpow.pop %v837
    %v839 = vadd.f32 %v838, 1.0
    %v840 = vrcp.pop %v839
    %v841 = vmul.f32 %v839, %v840
    %v842 = vsub.f32 1.0, %v841
    %v843 = vmul.f32 %v840, %v842
    %v844 = vadd.f32 %v840, %v843
    %vm845 = vweird.f32 %v839
    %vm846 = vweird.f32 %v840
    %vm847 = vmor %vm845, %vm846
    %v848 = vsel %vm847, %v840, %v844
    %v849 = vand.u32 2147483647, %v839
    %vm850 = vcmp.eq.f32.partialorder %v849, 8.507059e+37
    %v851 = vand.u32 %v839, 2147483648
    %v852 = vor.u32 1.1754944e-38, %v851
    %v853 = vsel %vm850, %v852, %v848
    %v854 = vmul.f32 1.0, %v853
    %v855 = vtanh.pop %v835
    %v857 = vrot.slane %v800, 6
    %v859 = vmul.f32 %v854, %v857
    %861 = vrot.lane.b32.xlu0 %v855, 64
    %v862 = vpop.permute.xlu0 %861
    %v864 = vmul.f32 %v854, %v862
    %866 = vrot.lane.b32.xlu0 %v864, 32
    %v867 = vpop.permute.xlu0 %866
    %v869 = vadd.f32 %v859, %v867
    %v870 = vtanh.pop %v869
    %872 = vrot.lane.b32.xlu0 %v870, 64
    %v873 = vpop.permute.xlu0 %872
    %v875 = vmul.f32 %v854, %v873
    %v877 = vrot.slane %v875, 2
    %878 = vrot.lane.b32.xlu0 %v877, 32
    %v879 = vpop.permute.xlu0 %878
    %v880 = vsel %vm116, %v879, 0
    %882 = vmatpush.msra.mxu0 0.0
    %883 = vmatpush.msra.mxu0 0.0
    %884 = vmatpush.msra.mxu0 0.0
    %885 = vmatpush.msra.mxu0 0.0
    %886 = vmatpush.msra.mxu0 0.0
    %887 = vmatpush.msra.mxu0 0.0
    %888 = vmatpush.msra.mxu0 0.0
    %889 = vmatpush.msra.mxu0 0.0
    %890 = vmatpush.msra.mxu0 0.0
    %891 = vmatpush.msra.mxu0 0.0
    %892 = vmatpush.msra.mxu0 0.0
    %893 = vmatpush.msra.mxu0 0.0
    %894 = vmatpush.msra.mxu0 %v710
    %895 = vmatpush.msra.mxu0 %v709
    %896 = vmatpush.msra.mxu0 %v708
    %897 = vmatpush.msra.mxu0 %v707
    %898 = vmatmul.f32.gmra.mxu0 %v880
    %v899 = vpop.f32.mrf.mxu0
    %v900 = vadd.f32 0.0, %v899
    %901 = vdwg.mxu0
    %v903 = vrot.slane %v900, 4
    %v905 = vadd.f32 %v744, %v903
    %v906 = vxor.u32 %v905, 2147483648
    %v907 = vmul.f32 %v906, 1.442695
    %v908 = vpow.pop %v907
    %v909 = vadd.f32 %v908, 1.0
    %v910 = vrcp.pop %v909
    %v911 = vmul.f32 %v909, %v910
    %v912 = vsub.f32 1.0, %v911
    %v913 = vmul.f32 %v910, %v912
    %v914 = vadd.f32 %v910, %v913
    %vm915 = vweird.f32 %v909
    %vm916 = vweird.f32 %v910
    %vm917 = vmor %vm915, %vm916
    %v918 = vsel %vm917, %v910, %v914
    %v919 = vand.u32 2147483647, %v909
    %vm920 = vcmp.eq.f32.partialorder %v919, 8.507059e+37
    %v921 = vand.u32 %v909, 2147483648
    %v922 = vor.u32 1.1754944e-38, %v921
    %v923 = vsel %vm920, %v922, %v918
    %v924 = vmul.f32 1.0, %v923
    %v925 = vtanh.pop %v905
    %v927 = vrot.slane %v869, 6
    %v929 = vmul.f32 %v924, %v927
    %931 = vrot.lane.b32.xlu0 %v925, 64
    %v932 = vpop.permute.xlu0 %931
    %v934 = vmul.f32 %v924, %v932
    %936 = vrot.lane.b32.xlu0 %v934, 32
    %v937 = vpop.permute.xlu0 %936
    %v939 = vadd.f32 %v929, %v937
    %v940 = vtanh.pop %v939
    %942 = vrot.lane.b32.xlu0 %v940, 64
    %v943 = vpop.permute.xlu0 %942
    %v945 = vmul.f32 %v924, %v943
    %v947 = vrot.slane %v945, 4
    %948 = vrot.lane.b32.xlu0 %v947, 32
    %v949 = vpop.permute.xlu0 %948
    %v950 = vsel %vm116, %v949, 0
    %952 = vmatpush.msra.mxu0 0.0
    %953 = vmatpush.msra.mxu0 0.0
    %954 = vmatpush.msra.mxu0 0.0
    %955 = vmatpush.msra.mxu0 0.0
    %956 = vmatpush.msra.mxu0 0.0
    %957 = vmatpush.msra.mxu0 0.0
    %958 = vmatpush.msra.mxu0 0.0
    %959 = vmatpush.msra.mxu0 0.0
    %960 = vmatpush.msra.mxu0 0.0
    %961 = vmatpush.msra.mxu0 0.0
    %962 = vmatpush.msra.mxu0 0.0
    %963 = vmatpush.msra.mxu0 0.0
    %964 = vmatpush.msra.mxu0 %v710
    %965 = vmatpush.msra.mxu0 %v709
    %966 = vmatpush.msra.mxu0 %v708
    %967 = vmatpush.msra.mxu0 %v707
    %968 = vmatmul.f32.gmra.mxu0 %v950
    %v969 = vpop.f32.mrf.mxu0
    %v970 = vadd.f32 0.0, %v969
    %971 = vdwg.mxu0
    %v973 = vrot.slane %v970, 2
    %v975 = vadd.f32 %v744, %v973
    %v976 = vxor.u32 %v975, 2147483648
    %v977 = vmul.f32 %v976, 1.442695
    %v978 = vpow.pop %v977
    %v979 = vadd.f32 %v978, 1.0
    %v980 = vrcp.pop %v979
    %v981 = vmul.f32 %v979, %v980
    %v982 = vsub.f32 1.0, %v981
    %v983 = vmul.f32 %v980, %v982
    %v984 = vadd.f32 %v980, %v983
    %vm985 = vweird.f32 %v979
    %vm986 = vweird.f32 %v980
    %vm987 = vmor %vm985, %vm986
    %v988 = vsel %vm987, %v980, %v984
    %v989 = vand.u32 2147483647, %v979
    %vm990 = vcmp.eq.f32.partialorder %v989, 8.507059e+37
    %v991 = vand.u32 %v979, 2147483648
    %v992 = vor.u32 1.1754944e-38, %v991
    %v993 = vsel %vm990, %v992, %v988
    %v994 = vmul.f32 1.0, %v993
    %v995 = vtanh.pop %v975
    %v997 = vrot.slane %v939, 6
    %v999 = vmul.f32 %v994, %v997
    %1001 = vrot.lane.b32.xlu0 %v995, 64
    %v1002 = vpop.permute.xlu0 %1001
    %v1004 = vmul.f32 %v994, %v1002
    %1006 = vrot.lane.b32.xlu0 %v1004, 32
    %v1007 = vpop.permute.xlu0 %1006
    %v1009 = vadd.f32 %v999, %v1007
    %v1010 = vtanh.pop %v1009
    %1012 = vrot.lane.b32.xlu0 %v1010, 64
    %v1013 = vpop.permute.xlu0 %1012
    %v1015 = vmul.f32 %v994, %v1013
    %v1017 = vrot.slane %v1015, 6
    %1018 = vrot.lane.b32.xlu0 %v1017, 32
    %v1019 = vpop.permute.xlu0 %1018
    %v1020 = vsel %vm116, %v1019, 0
    %1022 = vmatpush.msra.mxu0 0.0
    %1023 = vmatpush.msra.mxu0 0.0
    %1024 = vmatpush.msra.mxu0 0.0
    %1025 = vmatpush.msra.mxu0 0.0
    %1026 = vmatpush.msra.mxu0 0.0
    %1027 = vmatpush.msra.mxu0 0.0
    %1028 = vmatpush.msra.mxu0 0.0
    %1029 = vmatpush.msra.mxu0 0.0
    %1030 = vmatpush.msra.mxu0 0.0
    %1031 = vmatpush.msra.mxu0 0.0
    %1032 = vmatpush.msra.mxu0 0.0
    %1033 = vmatpush.msra.mxu0 0.0
    %1034 = vmatpush.msra.mxu0 %v710
    %1035 = vmatpush.msra.mxu0 %v709
    %1036 = vmatpush.msra.mxu0 %v708
    %1037 = vmatpush.msra.mxu0 %v707
    %1038 = vmatmul.f32.gmra.mxu0 %v1020
    %v1039 = vpop.f32.mrf.mxu0
    %v1040 = vadd.f32 0.0, %v1039
    %1041 = vdwg.mxu0
    %v1042 = vadd.f32 %v747, %v1040
    %v1043 = vxor.u32 %v1042, 2147483648
    %v1044 = vmul.f32 %v1043, 1.442695
    %v1045 = vpow.pop %v1044
    %v1046 = vadd.f32 %v1045, 1.0
    %v1047 = vrcp.pop %v1046
    %v1048 = vmul.f32 %v1046, %v1047
    %v1049 = vsub.f32 1.0, %v1048
    %v1050 = vmul.f32 %v1047, %v1049
    %v1051 = vadd.f32 %v1047, %v1050
    %vm1052 = vweird.f32 %v1046
    %vm1053 = vweird.f32 %v1047
    %vm1054 = vmor %vm1052, %vm1053
    %v1055 = vsel %vm1054, %v1047, %v1051
    %v1056 = vand.u32 2147483647, %v1046
    %vm1057 = vcmp.eq.f32.partialorder %v1056, 8.507059e+37
    %v1058 = vand.u32 %v1046, 2147483648
    %v1059 = vor.u32 1.1754944e-38, %v1058
    %v1060 = vsel %vm1057, %v1059, %v1055
    %v1061 = vmul.f32 1.0, %v1060
    %v1062 = vtanh.pop %v1042
    %v1064 = vrot.slane %v1009, 6
    %v1066 = vmul.f32 %v1061, %v1064
    %1068 = vrot.lane.b32.xlu0 %v1062, 64
    %v1069 = vpop.permute.xlu0 %1068
    %v1071 = vmul.f32 %v1061, %v1069
    %1073 = vrot.lane.b32.xlu0 %v1071, 32
    %v1074 = vpop.permute.xlu0 %1073
    %v1076 = vadd.f32 %v1066, %v1074
    %v1077 = vtanh.pop %v1076
    %1079 = vrot.lane.b32.xlu0 %v1077, 64
    %v1080 = vpop.permute.xlu0 %1079
    %v1082 = vmul.f32 %v1061, %v1080
    %1084 = vrot.lane.b32.xlu0 %v1082, 32
    %v1085 = vpop.permute.xlu0 %1084
    %v1086 = vsel %vm116, %v1085, 0
    %1088 = vmatpush.msra.mxu0 0.0
    %1089 = vmatpush.msra.mxu0 0.0
    %1090 = vmatpush.msra.mxu0 0.0
    %1091 = vmatpush.msra.mxu0 0.0
    %1092 = vmatpush.msra.mxu0 0.0
    %1093 = vmatpush.msra.mxu0 0.0
    %1094 = vmatpush.msra.mxu0 0.0
    %1095 = vmatpush.msra.mxu0 0.0
    %1096 = vmatpush.msra.mxu0 0.0
    %1097 = vmatpush.msra.mxu0 0.0
    %1098 = vmatpush.msra.mxu0 0.0
    %1099 = vmatpush.msra.mxu0 0.0
    %1100 = vmatpush.msra.mxu0 %v710
    %1101 = vmatpush.msra.mxu0 %v709
    %1102 = vmatpush.msra.mxu0 %v708
    %1103 = vmatpush.msra.mxu0 %v707
    %1104 = vmatmul.f32.gmra.mxu0 %v1086
    %v1105 = vpop.f32.mrf.mxu0
    %v1106 = vadd.f32 0.0, %v1105
    %1107 = vdwg.mxu0
    %v1109 = vrot.slane %v1106, 6
    %v1111 = vadd.f32 %v747, %v1109
    %v1112 = vxor.u32 %v1111, 2147483648
    %v1113 = vmul.f32 %v1112, 1.442695
    %v1114 = vpow.pop %v1113
    %v1115 = vadd.f32 %v1114, 1.0
    %v1116 = vrcp.pop %v1115
    %v1117 = vmul.f32 %v1115, %v1116
    %v1118 = vsub.f32 1.0, %v1117
    %v1119 = vmul.f32 %v1116, %v1118
    %v1120 = vadd.f32 %v1116, %v1119
    %vm1121 = vweird.f32 %v1115
    %vm1122 = vweird.f32 %v1116
    %vm1123 = vmor %vm1121, %vm1122
    %v1124 = vsel %vm1123, %v1116, %v1120
    %v1125 = vand.u32 2147483647, %v1115
    %vm1126 = vcmp.eq.f32.partialorder %v1125, 8.507059e+37
    %v1127 = vand.u32 %v1115, 2147483648
    %v1128 = vor.u32 1.1754944e-38, %v1127
    %v1129 = vsel %vm1126, %v1128, %v1124
    %v1130 = vmul.f32 1.0, %v1129
    %v1131 = vtanh.pop %v1111
    %v1133 = vrot.slane %v1076, 6
    %v1135 = vmul.f32 %v1130, %v1133
    %1137 = vrot.lane.b32.xlu0 %v1131, 64
    %v1138 = vpop.permute.xlu0 %1137
    %v1140 = vmul.f32 %v1130, %v1138
    %1142 = vrot.lane.b32.xlu0 %v1140, 32
    %v1143 = vpop.permute.xlu0 %1142
    %v1145 = vadd.f32 %v1135, %v1143
    %v1146 = vtanh.pop %v1145
    %1148 = vrot.lane.b32.xlu0 %v1146, 64
    %v1149 = vpop.permute.xlu0 %1148
    %v1151 = vmul.f32 %v1130, %v1149
    %v1153 = vrot.slane %v1151, 2
    %1154 = vrot.lane.b32.xlu0 %v1153, 32
    %v1155 = vpop.permute.xlu0 %1154
    %v1156 = vsel %vm116, %v1155, 0
    %1158 = vmatpush.msra.mxu0 0.0
    %1159 = vmatpush.msra.mxu0 0.0
    %1160 = vmatpush.msra.mxu0 0.0
    %1161 = vmatpush.msra.mxu0 0.0
    %1162 = vmatpush.msra.mxu0 0.0
    %1163 = vmatpush.msra.mxu0 0.0
    %1164 = vmatpush.msra.mxu0 0.0
    %1165 = vmatpush.msra.mxu0 0.0
    %1166 = vmatpush.msra.mxu0 0.0
    %1167 = vmatpush.msra.mxu0 0.0
    %1168 = vmatpush.msra.mxu0 0.0
    %1169 = vmatpush.msra.mxu0 0.0
    %1170 = vmatpush.msra.mxu0 %v710
    %1171 = vmatpush.msra.mxu0 %v709
    %1172 = vmatpush.msra.mxu0 %v708
    %1173 = vmatpush.msra.mxu0 %v707
    %1174 = vmatmul.f32.gmra.mxu0 %v1156
    %v1175 = vpop.f32.mrf.mxu0
    %v1176 = vadd.f32 0.0, %v1175
    %1177 = vdwg.mxu0
    %v1179 = vrot.slane %v1176, 4
    %v1181 = vadd.f32 %v747, %v1179
    %v1182 = vxor.u32 %v1181, 2147483648
    %v1183 = vmul.f32 %v1182, 1.442695
    %v1184 = vpow.pop %v1183
    %v1185 = vadd.f32 %v1184, 1.0
    %v1186 = vrcp.pop %v1185
    %v1187 = vmul.f32 %v1185, %v1186
    %v1188 = vsub.f32 1.0, %v1187
    %v1189 = vmul.f32 %v1186, %v1188
    %v1190 = vadd.f32 %v1186, %v1189
    %vm1191 = vweird.f32 %v1185
    %vm1192 = vweird.f32 %v1186
    %vm1193 = vmor %vm1191, %vm1192
    %v1194 = vsel %vm1193, %v1186, %v1190
    %v1195 = vand.u32 2147483647, %v1185
    %vm1196 = vcmp.eq.f32.partialorder %v1195, 8.507059e+37
    %v1197 = vand.u32 %v1185, 2147483648
    %v1198 = vor.u32 1.1754944e-38, %v1197
    %v1199 = vsel %vm1196, %v1198, %v1194
    %v1200 = vmul.f32 1.0, %v1199
    %v1201 = vtanh.pop %v1181
    %v1203 = vrot.slane %v1145, 6
    %v1205 = vmul.f32 %v1200, %v1203
    %1207 = vrot.lane.b32.xlu0 %v1201, 64
    %v1208 = vpop.permute.xlu0 %1207
    %v1210 = vmul.f32 %v1200, %v1208
    %1212 = vrot.lane.b32.xlu0 %v1210, 32
    %v1213 = vpop.permute.xlu0 %1212
    %v1215 = vadd.f32 %v1205, %v1213
    %v1216 = vtanh.pop %v1215
    %1218 = vrot.lane.b32.xlu0 %v1216, 64
    %v1219 = vpop.permute.xlu0 %1218
    %v1221 = vmul.f32 %v1200, %v1219
    %v1223 = vrot.slane %v1221, 4
    %1224 = vrot.lane.b32.xlu0 %v1223, 32
    %v1225 = vpop.permute.xlu0 %1224
    %v1226 = vsel %vm116, %v1225, 0
    %1228 = vmatpush.msra.mxu0 0.0
    %1229 = vmatpush.msra.mxu0 0.0
    %1230 = vmatpush.msra.mxu0 0.0
    %1231 = vmatpush.msra.mxu0 0.0
    %1232 = vmatpush.msra.mxu0 0.0
    %1233 = vmatpush.msra.mxu0 0.0
    %1234 = vmatpush.msra.mxu0 0.0
    %1235 = vmatpush.msra.mxu0 0.0
    %1236 = vmatpush.msra.mxu0 0.0
    %1237 = vmatpush.msra.mxu0 0.0
    %1238 = vmatpush.msra.mxu0 0.0
    %1239 = vmatpush.msra.mxu0 0.0
    %1240 = vmatpush.msra.mxu0 %v710
    %1241 = vmatpush.msra.mxu0 %v709
    %1242 = vmatpush.msra.mxu0 %v708
    %1243 = vmatpush.msra.mxu0 %v707
    %1244 = vmatmul.f32.gmra.mxu0 %v1226
    %v1245 = vpop.f32.mrf.mxu0
    %v1246 = vadd.f32 0.0, %v1245
    %1247 = vdwg.mxu0
    %v1249 = vrot.slane %v1246, 2
    %v1251 = vadd.f32 %v747, %v1249
    %v1252 = vxor.u32 %v1251, 2147483648
    %v1253 = vmul.f32 %v1252, 1.442695
    %v1254 = vpow.pop %v1253
    %v1255 = vadd.f32 %v1254, 1.0
    %v1256 = vrcp.pop %v1255
    %v1257 = vmul.f32 %v1255, %v1256
    %v1258 = vsub.f32 1.0, %v1257
    %v1259 = vmul.f32 %v1256, %v1258
    %v1260 = vadd.f32 %v1256, %v1259
    %vm1261 = vweird.f32 %v1255
    %vm1262 = vweird.f32 %v1256
    %vm1263 = vmor %vm1261, %vm1262
    %v1264 = vsel %vm1263, %v1256, %v1260
    %v1265 = vand.u32 2147483647, %v1255
    %vm1266 = vcmp.eq.f32.partialorder %v1265, 8.507059e+37
    %v1267 = vand.u32 %v1255, 2147483648
    %v1268 = vor.u32 1.1754944e-38, %v1267
    %v1269 = vsel %vm1266, %v1268, %v1264
    %v1270 = vmul.f32 1.0, %v1269
    %v1271 = vtanh.pop %v1251
    %v1273 = vrot.slane %v1215, 6
    %v1275 = vmul.f32 %v1270, %v1273
    %1277 = vrot.lane.b32.xlu0 %v1271, 64
    %v1278 = vpop.permute.xlu0 %1277
    %v1280 = vmul.f32 %v1270, %v1278
    %1282 = vrot.lane.b32.xlu0 %v1280, 32
    %v1283 = vpop.permute.xlu0 %1282
    %v1285 = vadd.f32 %v1275, %v1283
    %v1286 = vtanh.pop %v1285
    %1288 = vrot.lane.b32.xlu0 %v1286, 64
    %v1289 = vpop.permute.xlu0 %1288
    %v1291 = vmul.f32 %v1270, %v1289
    %v1292 = vsel %vm692, %v806, %v875
    %v1293 = vsel %vm694, %v1292, %v945
    %v1294 = vsel %vm696, %v1293, %v1015
    %v1295 = vsel %vm692, %v1082, %v1151
    %v1296 = vsel %vm694, %v1295, %v1221
    %v1297 = vsel %vm696, %v1296, %v1291
    %s1298 = scalar_lea.vmem [#allocation5], 64
    %v1299 = vld [vmem:[%s1298] sm:$0xff]
    %v1300 = vld [vmem:[%s1298 + $0x8] sm:$0xff]
    %v1301 = vld [vmem:[%s1298 + $0x10] sm:$0xff]
    %v1302 = vld [vmem:[%s1298 + $0x18] sm:$0xff]
    %s1303 = scalar_lea.vmem [#allocation7], 64
    %v1304 = vld [vmem:[%s1303] sm:$0xff]
    %v1305 = vld [vmem:[%s1303 + $0x8] sm:$0xff]
    %v1306 = vld [vmem:[%s1303 + $0x10] sm:$0xff]
    %v1307 = vld [vmem:[%s1303 + $0x18] sm:$0xff]
    %s1308 = scalar_lea.vmem [#allocation8], 2
    %v1309 = vld [vmem:[%s1308] sm:$0x1]
    %v1311 = vperm.slane %v1309, 0
    %1315 = vrot.lane.b32.xlu0 %v1294, 32
    %v1316 = vpop.permute.xlu0 %1315
    %1317 = vrot.lane.b32.xlu0 %v1297, 32
    %v1318 = vpop.permute.xlu0 %1317
    %v1319 = vsel %vm116, %v1316, 0
    %v1321 = vsel %vm116, %v1318, 0
    %1323 = vmatpush.msra.mxu0 0.0
    %1324 = vmatpush.msra.mxu0 0.0
    %1325 = vmatpush.msra.mxu0 0.0
    %1326 = vmatpush.msra.mxu0 0.0
    %1327 = vmatpush.msra.mxu0 0.0
    %1328 = vmatpush.msra.mxu0 0.0
    %1329 = vmatpush.msra.mxu0 0.0
    %1330 = vmatpush.msra.mxu0 0.0
    %1331 = vmatpush.msra.mxu0 0.0
    %1332 = vmatpush.msra.mxu0 0.0
    %1333 = vmatpush.msra.mxu0 0.0
    %1334 = vmatpush.msra.mxu0 0.0
    %1335 = vmatpush.msra.mxu0 %v1302
    %1336 = vmatpush.msra.mxu0 %v1301
    %1337 = vmatpush.msra.mxu0 %v1300
    %1338 = vmatpush.msra.mxu0 %v1299
    %1339 = vmatmul.f32.gmra.mxu0 %v1319
    %v1340 = vpop.f32.mrf.mxu0
    %v1341 = vadd.f32 %v1311, %v1340
    %1342 = vmatmul.f32.gmra.mxu0 %v1321
    %v1343 = vpop.f32.mrf.mxu0
    %v1344 = vadd.f32 %v1311, %v1343
    %1345 = vdwg.mxu0
    %1346 = vmatpush.msra.mxu0 0.0
    %1347 = vmatpush.msra.mxu0 0.0
    %1348 = vmatpush.msra.mxu0 0.0
    %1349 = vmatpush.msra.mxu0 0.0
    %1350 = vmatpush.msra.mxu0 0.0
    %1351 = vmatpush.msra.mxu0 0.0
    %1352 = vmatpush.msra.mxu0 0.0
    %1353 = vmatpush.msra.mxu0 0.0
    %1354 = vmatpush.msra.mxu0 0.0
    %1355 = vmatpush.msra.mxu0 0.0
    %1356 = vmatpush.msra.mxu0 0.0
    %1357 = vmatpush.msra.mxu0 0.0
    %1358 = vmatpush.msra.mxu0 %v1307
    %1359 = vmatpush.msra.mxu0 %v1306
    %1360 = vmatpush.msra.mxu0 %v1305
    %1361 = vmatpush.msra.mxu0 %v1304
    %1362 = vmatmul.f32.gmra.mxu0 %v147
    %v1363 = vpop.f32.mrf.mxu0
    %v1364 = vadd.f32 0.0, %v1363
    %1365 = vdwg.mxu0
    %v1366 = vadd.f32 %v1341, %v1364
    %v1367 = vxor.u32 %v1366, 2147483648
    %v1368 = vmul.f32 %v1367, 1.442695
    %v1369 = vpow.pop %v1368
    %v1370 = vadd.f32 %v1369, 1.0
    %v1371 = vrcp.pop %v1370
    %v1372 = vmul.f32 %v1370, %v1371
    %v1373 = vsub.f32 1.0, %v1372
    %v1374 = vmul.f32 %v1371, %v1373
    %v1375 = vadd.f32 %v1371, %v1374
    %vm1376 = vweird.f32 %v1370
    %vm1377 = vweird.f32 %v1371
    %vm1378 = vmor %vm1376, %vm1377
    %v1379 = vsel %vm1378, %v1371, %v1375
    %v1380 = vand.u32 2147483647, %v1370
    %vm1381 = vcmp.eq.f32.partialorder %v1380, 8.507059e+37
    %v1382 = vand.u32 %v1370, 2147483648
    %v1383 = vor.u32 1.1754944e-38, %v1382
    %v1384 = vsel %vm1381, %v1383, %v1379
    %v1385 = vmul.f32 1.0, %v1384
    %v1386 = vtanh.pop %v1366
    %v1387 = vmul.f32 %v1385, 0.0
    %1389 = vrot.lane.b32.xlu0 %v1386, 64
    %v1390 = vpop.permute.xlu0 %1389
    %v1392 = vmul.f32 %v1385, %v1390
    %1394 = vrot.lane.b32.xlu0 %v1392, 32
    %v1395 = vpop.permute.xlu0 %1394
    %v1397 = vadd.f32 %v1387, %v1395
    %v1398 = vtanh.pop %v1397
    %1400 = vrot.lane.b32.xlu0 %v1398, 64
    %v1401 = vpop.permute.xlu0 %1400
    %v1403 = vmul.f32 %v1385, %v1401
    %1405 = vrot.lane.b32.xlu0 %v1403, 32
    %v1406 = vpop.permute.xlu0 %1405
    %v1407 = vsel %vm116, %v1406, 0
    %1409 = vmatpush.msra.mxu0 0.0
    %1410 = vmatpush.msra.mxu0 0.0
    %1411 = vmatpush.msra.mxu0 0.0
    %1412 = vmatpush.msra.mxu0 0.0
    %1413 = vmatpush.msra.mxu0 0.0
    %1414 = vmatpush.msra.mxu0 0.0
    %1415 = vmatpush.msra.mxu0 0.0
    %1416 = vmatpush.msra.mxu0 0.0
    %1417 = vmatpush.msra.mxu0 0.0
    %1418 = vmatpush.msra.mxu0 0.0
    %1419 = vmatpush.msra.mxu0 0.0
    %1420 = vmatpush.msra.mxu0 0.0
    %1421 = vmatpush.msra.mxu0 %v1307
    %1422 = vmatpush.msra.mxu0 %v1306
    %1423 = vmatpush.msra.mxu0 %v1305
    %1424 = vmatpush.msra.mxu0 %v1304
    %1425 = vmatmul.f32.gmra.mxu0 %v1407
    %v1426 = vpop.f32.mrf.mxu0
    %v1427 = vadd.f32 0.0, %v1426
    %1428 = vdwg.mxu0
    %v1430 = vrot.slane %v1427, 6
    %v1432 = vadd.f32 %v1341, %v1430
    %v1433 = vxor.u32 %v1432, 2147483648
    %v1434 = vmul.f32 %v1433, 1.442695
    %v1435 = vpow.pop %v1434
    %v1436 = vadd.f32 %v1435, 1.0
    %v1437 = vrcp.pop %v1436
    %v1438 = vmul.f32 %v1436, %v1437
    %v1439 = vsub.f32 1.0, %v1438
    %v1440 = vmul.f32 %v1437, %v1439
    %v1441 = vadd.f32 %v1437, %v1440
    %vm1442 = vweird.f32 %v1436
    %vm1443 = vweird.f32 %v1437
    %vm1444 = vmor %vm1442, %vm1443
    %v1445 = vsel %vm1444, %v1437, %v1441
    %v1446 = vand.u32 2147483647, %v1436
    %vm1447 = vcmp.eq.f32.partialorder %v1446, 8.507059e+37
    %v1448 = vand.u32 %v1436, 2147483648
    %v1449 = vor.u32 1.1754944e-38, %v1448
    %v1450 = vsel %vm1447, %v1449, %v1445
    %v1451 = vmul.f32 1.0, %v1450
    %v1452 = vtanh.pop %v1432
    %v1454 = vrot.slane %v1397, 6
    %v1456 = vmul.f32 %v1451, %v1454
    %1458 = vrot.lane.b32.xlu0 %v1452, 64
    %v1459 = vpop.permute.xlu0 %1458
    %v1461 = vmul.f32 %v1451, %v1459
    %1463 = vrot.lane.b32.xlu0 %v1461, 32
    %v1464 = vpop.permute.xlu0 %1463
    %v1466 = vadd.f32 %v1456, %v1464
    %v1467 = vtanh.pop %v1466
    %1469 = vrot.lane.b32.xlu0 %v1467, 64
    %v1470 = vpop.permute.xlu0 %1469
    %v1472 = vmul.f32 %v1451, %v1470
    %v1474 = vrot.slane %v1472, 2
    %1475 = vrot.lane.b32.xlu0 %v1474, 32
    %v1476 = vpop.permute.xlu0 %1475
    %v1477 = vsel %vm116, %v1476, 0
    %1479 = vmatpush.msra.mxu0 0.0
    %1480 = vmatpush.msra.mxu0 0.0
    %1481 = vmatpush.msra.mxu0 0.0
    %1482 = vmatpush.msra.mxu0 0.0
    %1483 = vmatpush.msra.mxu0 0.0
    %1484 = vmatpush.msra.mxu0 0.0
    %1485 = vmatpush.msra.mxu0 0.0
    %1486 = vmatpush.msra.mxu0 0.0
    %1487 = vmatpush.msra.mxu0 0.0
    %1488 = vmatpush.msra.mxu0 0.0
    %1489 = vmatpush.msra.mxu0 0.0
    %1490 = vmatpush.msra.mxu0 0.0
    %1491 = vmatpush.msra.mxu0 %v1307
    %1492 = vmatpush.msra.mxu0 %v1306
    %1493 = vmatpush.msra.mxu0 %v1305
    %1494 = vmatpush.msra.mxu0 %v1304
    %1495 = vmatmul.f32.gmra.mxu0 %v1477
    %v1496 = vpop.f32.mrf.mxu0
    %v1497 = vadd.f32 0.0, %v1496
    %1498 = vdwg.mxu0
    %v1500 = vrot.slane %v1497, 4
    %v1502 = vadd.f32 %v1341, %v1500
    %v1503 = vxor.u32 %v1502, 2147483648
    %v1504 = vmul.f32 %v1503, 1.442695
    %v1505 = vpow.pop %v1504
    %v1506 = vadd.f32 %v1505, 1.0
    %v1507 = vrcp.pop %v1506
    %v1508 = vmul.f32 %v1506, %v1507
    %v1509 = vsub.f32 1.0, %v1508
    %v1510 = vmul.f32 %v1507, %v1509
    %v1511 = vadd.f32 %v1507, %v1510
    %vm1512 = vweird.f32 %v1506
    %vm1513 = vweird.f32 %v1507
    %vm1514 = vmor %vm1512, %vm1513
    %v1515 = vsel %vm1514, %v1507, %v1511
    %v1516 = vand.u32 2147483647, %v1506
    %vm1517 = vcmp.eq.f32.partialorder %v1516, 8.507059e+37
    %v1518 = vand.u32 %v1506, 2147483648
    %v1519 = vor.u32 1.1754944e-38, %v1518
    %v1520 = vsel %vm1517, %v1519, %v1515
    %v1521 = vmul.f32 1.0, %v1520
    %v1522 = vtanh.pop %v1502
    %v1524 = vrot.slane %v1466, 6
    %v1526 = vmul.f32 %v1521, %v1524
    %1528 = vrot.lane.b32.xlu0 %v1522, 64
    %v1529 = vpop.permute.xlu0 %1528
    %v1531 = vmul.f32 %v1521, %v1529
    %1533 = vrot.lane.b32.xlu0 %v1531, 32
    %v1534 = vpop.permute.xlu0 %1533
    %v1536 = vadd.f32 %v1526, %v1534
    %v1537 = vtanh.pop %v1536
    %1539 = vrot.lane.b32.xlu0 %v1537, 64
    %v1540 = vpop.permute.xlu0 %1539
    %v1542 = vmul.f32 %v1521, %v1540
    %v1544 = vrot.slane %v1542, 4
    %1545 = vrot.lane.b32.xlu0 %v1544, 32
    %v1546 = vpop.permute.xlu0 %1545
    %v1547 = vsel %vm116, %v1546, 0
    %1549 = vmatpush.msra.mxu0 0.0
    %1550 = vmatpush.msra.mxu0 0.0
    %1551 = vmatpush.msra.mxu0 0.0
    %1552 = vmatpush.msra.mxu0 0.0
    %1553 = vmatpush.msra.mxu0 0.0
    %1554 = vmatpush.msra.mxu0 0.0
    %1555 = vmatpush.msra.mxu0 0.0
    %1556 = vmatpush.msra.mxu0 0.0
    %1557 = vmatpush.msra.mxu0 0.0
    %1558 = vmatpush.msra.mxu0 0.0
    %1559 = vmatpush.msra.mxu0 0.0
    %1560 = vmatpush.msra.mxu0 0.0
    %1561 = vmatpush.msra.mxu0 %v1307
    %1562 = vmatpush.msra.mxu0 %v1306
    %1563 = vmatpush.msra.mxu0 %v1305
    %1564 = vmatpush.msra.mxu0 %v1304
    %1565 = vmatmul.f32.gmra.mxu0 %v1547
    %v1566 = vpop.f32.mrf.mxu0
    %v1567 = vadd.f32 0.0, %v1566
    %1568 = vdwg.mxu0
    %v1570 = vrot.slane %v1567, 2
    %v1572 = vadd.f32 %v1341, %v1570
    %v1573 = vxor.u32 %v1572, 2147483648
    %v1574 = vmul.f32 %v1573, 1.442695
    %v1575 = vpow.pop %v1574
    %v1576 = vadd.f32 %v1575, 1.0
    %v1577 = vrcp.pop %v1576
    %v1578 = vmul.f32 %v1576, %v1577
    %v1579 = vsub.f32 1.0, %v1578
    %v1580 = vmul.f32 %v1577, %v1579
    %v1581 = vadd.f32 %v1577, %v1580
    %vm1582 = vweird.f32 %v1576
    %vm1583 = vweird.f32 %v1577
    %vm1584 = vmor %vm1582, %vm1583
    %v1585 = vsel %vm1584, %v1577, %v1581
    %v1586 = vand.u32 2147483647, %v1576
    %vm1587 = vcmp.eq.f32.partialorder %v1586, 8.507059e+37
    %v1588 = vand.u32 %v1576, 2147483648
    %v1589 = vor.u32 1.1754944e-38, %v1588
    %v1590 = vsel %vm1587, %v1589, %v1585
    %v1591 = vmul.f32 1.0, %v1590
    %v1592 = vtanh.pop %v1572
    %v1594 = vrot.slane %v1536, 6
    %v1596 = vmul.f32 %v1591, %v1594
    %1598 = vrot.lane.b32.xlu0 %v1592, 64
    %v1599 = vpop.permute.xlu0 %1598
    %v1601 = vmul.f32 %v1591, %v1599
    %1603 = vrot.lane.b32.xlu0 %v1601, 32
    %v1604 = vpop.permute.xlu0 %1603
    %v1606 = vadd.f32 %v1596, %v1604
    %v1607 = vtanh.pop %v1606
    %1609 = vrot.lane.b32.xlu0 %v1607, 64
    %v1610 = vpop.permute.xlu0 %1609
    %v1612 = vmul.f32 %v1591, %v1610
    %v1614 = vrot.slane %v1612, 6
    %1615 = vrot.lane.b32.xlu0 %v1614, 32
    %v1616 = vpop.permute.xlu0 %1615
    %v1617 = vsel %vm116, %v1616, 0
    %1619 = vmatpush.msra.mxu0 0.0
    %1620 = vmatpush.msra.mxu0 0.0
    %1621 = vmatpush.msra.mxu0 0.0
    %1622 = vmatpush.msra.mxu0 0.0
    %1623 = vmatpush.msra.mxu0 0.0
    %1624 = vmatpush.msra.mxu0 0.0
    %1625 = vmatpush.msra.mxu0 0.0
    %1626 = vmatpush.msra.mxu0 0.0
    %1627 = vmatpush.msra.mxu0 0.0
    %1628 = vmatpush.msra.mxu0 0.0
    %1629 = vmatpush.msra.mxu0 0.0
    %1630 = vmatpush.msra.mxu0 0.0
    %1631 = vmatpush.msra.mxu0 %v1307
    %1632 = vmatpush.msra.mxu0 %v1306
    %1633 = vmatpush.msra.mxu0 %v1305
    %1634 = vmatpush.msra.mxu0 %v1304
    %1635 = vmatmul.f32.gmra.mxu0 %v1617
    %v1636 = vpop.f32.mrf.mxu0
    %v1637 = vadd.f32 0.0, %v1636
    %1638 = vdwg.mxu0
    %v1639 = vadd.f32 %v1344, %v1637
    %v1640 = vxor.u32 %v1639, 2147483648
    %v1641 = vmul.f32 %v1640, 1.442695
    %v1642 = vpow.pop %v1641
    %v1643 = vadd.f32 %v1642, 1.0
    %v1644 = vrcp.pop %v1643
    %v1645 = vmul.f32 %v1643, %v1644
    %v1646 = vsub.f32 1.0, %v1645
    %v1647 = vmul.f32 %v1644, %v1646
    %v1648 = vadd.f32 %v1644, %v1647
    %vm1649 = vweird.f32 %v1643
    %vm1650 = vweird.f32 %v1644
    %vm1651 = vmor %vm1649, %vm1650
    %v1652 = vsel %vm1651, %v1644, %v1648
    %v1653 = vand.u32 2147483647, %v1643
    %vm1654 = vcmp.eq.f32.partialorder %v1653, 8.507059e+37
    %v1655 = vand.u32 %v1643, 2147483648
    %v1656 = vor.u32 1.1754944e-38, %v1655
    %v1657 = vsel %vm1654, %v1656, %v1652
    %v1658 = vmul.f32 1.0, %v1657
    %v1659 = vtanh.pop %v1639
    %v1661 = vrot.slane %v1606, 6
    %v1663 = vmul.f32 %v1658, %v1661
    %1665 = vrot.lane.b32.xlu0 %v1659, 64
    %v1666 = vpop.permute.xlu0 %1665
    %v1668 = vmul.f32 %v1658, %v1666
    %1670 = vrot.lane.b32.xlu0 %v1668, 32
    %v1671 = vpop.permute.xlu0 %1670
    %v1673 = vadd.f32 %v1663, %v1671
    %v1674 = vtanh.pop %v1673
    %1676 = vrot.lane.b32.xlu0 %v1674, 64
    %v1677 = vpop.permute.xlu0 %1676
    %v1679 = vmul.f32 %v1658, %v1677
    %1681 = vrot.lane.b32.xlu0 %v1679, 32
    %v1682 = vpop.permute.xlu0 %1681
    %v1683 = vsel %vm116, %v1682, 0
    %1685 = vmatpush.msra.mxu0 0.0
    %1686 = vmatpush.msra.mxu0 0.0
    %1687 = vmatpush.msra.mxu0 0.0
    %1688 = vmatpush.msra.mxu0 0.0
    %1689 = vmatpush.msra.mxu0 0.0
    %1690 = vmatpush.msra.mxu0 0.0
    %1691 = vmatpush.msra.mxu0 0.0
    %1692 = vmatpush.msra.mxu0 0.0
    %1693 = vmatpush.msra.mxu0 0.0
    %1694 = vmatpush.msra.mxu0 0.0
    %1695 = vmatpush.msra.mxu0 0.0
    %1696 = vmatpush.msra.mxu0 0.0
    %1697 = vmatpush.msra.mxu0 %v1307
    %1698 = vmatpush.msra.mxu0 %v1306
    %1699 = vmatpush.msra.mxu0 %v1305
    %1700 = vmatpush.msra.mxu0 %v1304
    %1701 = vmatmul.f32.gmra.mxu0 %v1683
    %v1702 = vpop.f32.mrf.mxu0
    %v1703 = vadd.f32 0.0, %v1702
    %1704 = vdwg.mxu0
    %v1706 = vrot.slane %v1703, 6
    %v1708 = vadd.f32 %v1344, %v1706
    %v1709 = vxor.u32 %v1708, 2147483648
    %v1710 = vmul.f32 %v1709, 1.442695
    %v1711 = vpow.pop %v1710
    %v1712 = vadd.f32 %v1711, 1.0
    %v1713 = vrcp.pop %v1712
    %v1714 = vmul.f32 %v1712, %v1713
    %v1715 = vsub.f32 1.0, %v1714
    %v1716 = vmul.f32 %v1713, %v1715
    %v1717 = vadd.f32 %v1713, %v1716
    %vm1718 = vweird.f32 %v1712
    %vm1719 = vweird.f32 %v1713
    %vm1720 = vmor %vm1718, %vm1719
    %v1721 = vsel %vm1720, %v1713, %v1717
    %v1722 = vand.u32 2147483647, %v1712
    %vm1723 = vcmp.eq.f32.partialorder %v1722, 8.507059e+37
    %v1724 = vand.u32 %v1712, 2147483648
    %v1725 = vor.u32 1.1754944e-38, %v1724
    %v1726 = vsel %vm1723, %v1725, %v1721
    %v1727 = vmul.f32 1.0, %v1726
    %v1728 = vtanh.pop %v1708
    %v1730 = vrot.slane %v1673, 6
    %v1732 = vmul.f32 %v1727, %v1730
    %1734 = vrot.lane.b32.xlu0 %v1728, 64
    %v1735 = vpop.permute.xlu0 %1734
    %v1737 = vmul.f32 %v1727, %v1735
    %1739 = vrot.lane.b32.xlu0 %v1737, 32
    %v1740 = vpop.permute.xlu0 %1739
    %v1742 = vadd.f32 %v1732, %v1740
    %v1743 = vtanh.pop %v1742
    %1745 = vrot.lane.b32.xlu0 %v1743, 64
    %v1746 = vpop.permute.xlu0 %1745
    %v1748 = vmul.f32 %v1727, %v1746
    %v1750 = vrot.slane %v1748, 2
    %1751 = vrot.lane.b32.xlu0 %v1750, 32
    %v1752 = vpop.permute.xlu0 %1751
    %v1753 = vsel %vm116, %v1752, 0
    %1755 = vmatpush.msra.mxu0 0.0
    %1756 = vmatpush.msra.mxu0 0.0
    %1757 = vmatpush.msra.mxu0 0.0
    %1758 = vmatpush.msra.mxu0 0.0
    %1759 = vmatpush.msra.mxu0 0.0
    %1760 = vmatpush.msra.mxu0 0.0
    %1761 = vmatpush.msra.mxu0 0.0
    %1762 = vmatpush.msra.mxu0 0.0
    %1763 = vmatpush.msra.mxu0 0.0
    %1764 = vmatpush.msra.mxu0 0.0
    %1765 = vmatpush.msra.mxu0 0.0
    %1766 = vmatpush.msra.mxu0 0.0
    %1767 = vmatpush.msra.mxu0 %v1307
    %1768 = vmatpush.msra.mxu0 %v1306
    %1769 = vmatpush.msra.mxu0 %v1305
    %1770 = vmatpush.msra.mxu0 %v1304
    %1771 = vmatmul.f32.gmra.mxu0 %v1753
    %v1772 = vpop.f32.mrf.mxu0
    %v1773 = vadd.f32 0.0, %v1772
    %1774 = vdwg.mxu0
    %v1776 = vrot.slane %v1773, 4
    %v1778 = vadd.f32 %v1344, %v1776
    %v1779 = vxor.u32 %v1778, 2147483648
    %v1780 = vmul.f32 %v1779, 1.442695
    %v1781 = vpow.pop %v1780
    %v1782 = vadd.f32 %v1781, 1.0
    %v1783 = vrcp.pop %v1782
    %v1784 = vmul.f32 %v1782, %v1783
    %v1785 = vsub.f32 1.0, %v1784
    %v1786 = vmul.f32 %v1783, %v1785
    %v1787 = vadd.f32 %v1783, %v1786
    %vm1788 = vweird.f32 %v1782
    %vm1789 = vweird.f32 %v1783
    %vm1790 = vmor %vm1788, %vm1789
    %v1791 = vsel %vm1790, %v1783, %v1787
    %v1792 = vand.u32 2147483647, %v1782
    %vm1793 = vcmp.eq.f32.partialorder %v1792, 8.507059e+37
    %v1794 = vand.u32 %v1782, 2147483648
    %v1795 = vor.u32 1.1754944e-38, %v1794
    %v1796 = vsel %vm1793, %v1795, %v1791
    %v1797 = vmul.f32 1.0, %v1796
    %v1798 = vtanh.pop %v1778
    %v1800 = vrot.slane %v1742, 6
    %v1802 = vmul.f32 %v1797, %v1800
    %1804 = vrot.lane.b32.xlu0 %v1798, 64
    %v1805 = vpop.permute.xlu0 %1804
    %v1807 = vmul.f32 %v1797, %v1805
    %1809 = vrot.lane.b32.xlu0 %v1807, 32
    %v1810 = vpop.permute.xlu0 %1809
    %v1812 = vadd.f32 %v1802, %v1810
    %v1813 = vtanh.pop %v1812
    %1815 = vrot.lane.b32.xlu0 %v1813, 64
    %v1816 = vpop.permute.xlu0 %1815
    %v1818 = vmul.f32 %v1797, %v1816
    %v1820 = vrot.slane %v1818, 4
    %1821 = vrot.lane.b32.xlu0 %v1820, 32
    %v1822 = vpop.permute.xlu0 %1821
    %v1823 = vsel %vm116, %v1822, 0
    %1825 = vmatpush.msra.mxu0 0.0
    %1826 = vmatpush.msra.mxu0 0.0
    %1827 = vmatpush.msra.mxu0 0.0
    %1828 = vmatpush.msra.mxu0 0.0
    %1829 = vmatpush.msra.mxu0 0.0
    %1830 = vmatpush.msra.mxu0 0.0
    %1831 = vmatpush.msra.mxu0 0.0
    %1832 = vmatpush.msra.mxu0 0.0
    %1833 = vmatpush.msra.mxu0 0.0
    %1834 = vmatpush.msra.mxu0 0.0
    %1835 = vmatpush.msra.mxu0 0.0
    %1836 = vmatpush.msra.mxu0 0.0
    %1837 = vmatpush.msra.mxu0 %v1307
    %1838 = vmatpush.msra.mxu0 %v1306
    %1839 = vmatpush.msra.mxu0 %v1305
    %1840 = vmatpush.msra.mxu0 %v1304
    %1841 = vmatmul.f32.gmra.mxu0 %v1823
    %v1842 = vpop.f32.mrf.mxu0
    %v1843 = vadd.f32 0.0, %v1842
    %1844 = vdwg.mxu0
    %v1846 = vrot.slane %v1843, 2
    %v1848 = vadd.f32 %v1344, %v1846
    %v1849 = vxor.u32 %v1848, 2147483648
    %v1850 = vmul.f32 %v1849, 1.442695
    %v1851 = vpow.pop %v1850
    %v1852 = vadd.f32 %v1851, 1.0
    %v1853 = vrcp.pop %v1852
    %v1854 = vmul.f32 %v1852, %v1853
    %v1855 = vsub.f32 1.0, %v1854
    %v1856 = vmul.f32 %v1853, %v1855
    %v1857 = vadd.f32 %v1853, %v1856
    %vm1858 = vweird.f32 %v1852
    %vm1859 = vweird.f32 %v1853
    %vm1860 = vmor %vm1858, %vm1859
    %v1861 = vsel %vm1860, %v1853, %v1857
    %v1862 = vand.u32 2147483647, %v1852
    %vm1863 = vcmp.eq.f32.partialorder %v1862, 8.507059e+37
    %v1864 = vand.u32 %v1852, 2147483648
    %v1865 = vor.u32 1.1754944e-38, %v1864
    %v1866 = vsel %vm1863, %v1865, %v1861
    %v1867 = vmul.f32 1.0, %v1866
    %v1868 = vtanh.pop %v1848
    %v1870 = vrot.slane %v1812, 6
    %v1872 = vmul.f32 %v1867, %v1870
    %1874 = vrot.lane.b32.xlu0 %v1868, 64
    %v1875 = vpop.permute.xlu0 %1874
    %v1877 = vmul.f32 %v1867, %v1875
    %1879 = vrot.lane.b32.xlu0 %v1877, 32
    %v1880 = vpop.permute.xlu0 %1879
    %v1882 = vadd.f32 %v1872, %v1880
    %v1883 = vtanh.pop %v1882
    %1885 = vrot.lane.b32.xlu0 %v1883, 64
    %v1886 = vpop.permute.xlu0 %1885
    %v1888 = vmul.f32 %v1867, %v1886
    %v1889 = vsel %vm692, %v1403, %v1472
    %v1890 = vsel %vm694, %v1889, %v1542
    %v1891 = vsel %vm696, %v1890, %v1612
    %v1892 = vsel %vm692, %v1679, %v1748
    %v1893 = vsel %vm694, %v1892, %v1818
    %v1894 = vsel %vm696, %v1893, %v1888
    %v1895 = vld [vmem:[#allocation10] sm:$0xff]
    %v1896 = vld [vmem:[#allocation10 + $0x8] sm:$0xff]
    %v1897 = vld [vmem:[#allocation10 + $0x10] sm:$0xff]
    %v1898 = vld [vmem:[#allocation10 + $0x18] sm:$0xff]
    %v1899 = vld [vmem:[%s5] sm:$0x1]
    %v1901 = vperm.slane %v1899, 0
    %1905 = vrot.lane.b32.xlu0 %v1891, 32
    %v1906 = vpop.permute.xlu0 %1905
    %1907 = vrot.lane.b32.xlu0 %v1894, 32
    %v1908 = vpop.permute.xlu0 %1907
    %v1909 = vsel %vm116, %v1906, 0
    %v1911 = vsel %vm116, %v1908, 0
    %1913 = vmatpush.msra.mxu0 0.0
    %1914 = vmatpush.msra.mxu0 0.0
    %1915 = vmatpush.msra.mxu0 0.0
    %1916 = vmatpush.msra.mxu0 0.0
    %1917 = vmatpush.msra.mxu0 0.0
    %1918 = vmatpush.msra.mxu0 0.0
    %1919 = vmatpush.msra.mxu0 0.0
    %1920 = vmatpush.msra.mxu0 0.0
    %1921 = vmatpush.msra.mxu0 0.0
    %1922 = vmatpush.msra.mxu0 0.0
    %1923 = vmatpush.msra.mxu0 0.0
    %1924 = vmatpush.msra.mxu0 0.0
    %1925 = vmatpush.msra.mxu0 %v1898
    %1926 = vmatpush.msra.mxu0 %v1897
    %1927 = vmatpush.msra.mxu0 %v1896
    %1928 = vmatpush.msra.mxu0 %v1895
    %1929 = vmatmul.f32.gmra.mxu0 %v1909
    %v1930 = vpop.f32.mrf.mxu0
    %v1931 = vadd.f32 %v1901, %v1930
    %1932 = vmatmul.f32.gmra.mxu0 %v1911
    %v1933 = vpop.f32.mrf.mxu0
    %v1934 = vadd.f32 %v1901, %v1933
    %1935 = vdwg.mxu0
    %1936 = vst.msk [vmem:[#allocation11] sm:$0xff] %vm116, %v1931
    %1937 = vst.msk [vmem:[#allocation11 + $0x8] sm:$0xff] %vm116, %v1934
    // Predicated region
    $region46: #{tpu_custom_call.1} parent=1 // pred_check
      _
    $region47: #{tpu_custom_call.1} parent=1 // pred_check_branch
      %1939 = sbr.rel (0) target = $region49
    $region48: #{tpu_custom_call.1} parent=1 // pred_region
      %1941 = vsyncadd [#allocation4], 0
      %s1942 = sshll.u32 [#allocation11], 4
      %s1943 = int_to_ptr.vmem [resolvable:$true] %s1942
      %s1944 = sshll.u32 %s6, 4
      %s1945 = int_to_ptr.hbm [resolvable:$true] %s1944
      %1950 = dma.vmem_to_hbm [thread:$0]  %s1943, 256, %s1945, [#allocation4], 128, 128, 8
    $region49: #{tpu_custom_call.1} parent=1 // pred_fallthru
      _
    // Predicated region
    $region50: #{tpu_custom_call.1} parent=1 // pred_check
      _
    $region51: #{tpu_custom_call.1} parent=1 // pred_check_branch
      %1952 = sbr.rel (0) target = $region53
    $region52: #{tpu_custom_call.1} parent=1 // pred_region
      %1954 = dma.done [#allocation4], 256
    $region53: #{tpu_custom_call.1} parent=1 // pred_fallthru
      _
    %1955 = vsyncpa [#allocation3], 1
    %1956 = vsyncpa [#allocation6], 1
    %1957 = vsyncpa [#allocation9], 1
    %1958 = vsyncpa [#allocation4], 1

</llo_original>
